<compile_context>
chip_gen: v7x
topology: tpu7x:2x2x1
jax: 0.10.0
libtpu: 0.0.40
codegen_flags: <defaults>
</compile_context>

<pallas_src>
import functools

import jax
import jax.numpy as jnp
from jax.experimental import pallas as pl
from jax.experimental.pallas import tpu as pltpu

LANE = 128
ACT_DTYPE = jnp.bfloat16
_VMEM_LIMIT = 32 * 1024 * 1024


def _round_up(x, m):
  return (x + m - 1) // m * m


# ----------------------------------------------------------------------------
# Pallas kernels
# ----------------------------------------------------------------------------
def _conv1x1a_kernel(x_ref, wa_ref, ba_ref, c1_ref):
  """c1 = relu(x @ wa + ba)   (BN scale folded into wa)."""
  y = jnp.dot(x_ref[...], wa_ref[...], preferred_element_type=jnp.float32)
  c1_ref[...] = jnp.maximum(y + ba_ref[...], 0.0).astype(c1_ref.dtype)


def _stage2_proj_kernel(p_ref, x_ref, w3_ref, b3_ref, wb_ref, bb_ref,
                        wc_ref, bc_ref, o_ref):
  """out = relu(relu(p@w3+b3) @ wb + bb + (x@wc + bc)); conv2 stays on-chip."""
  c2 = jnp.dot(p_ref[...], w3_ref[...], preferred_element_type=jnp.float32)
  c2 = jnp.maximum(c2 + b3_ref[...], 0.0)
  c3 = jnp.dot(c2.astype(wb_ref.dtype), wb_ref[...],
               preferred_element_type=jnp.float32) + bb_ref[...]
  sc = jnp.dot(x_ref[...], wc_ref[...],
               preferred_element_type=jnp.float32) + bc_ref[...]
  o_ref[...] = jnp.maximum(c3 + sc, 0.0).astype(o_ref.dtype)


def _stage2_identity_kernel(p_ref, x_ref, w3_ref, b3_ref, wb_ref, bb_ref,
                            o_ref):
  """out = relu(relu(p@w3+b3) @ wb + bb + x)  (identity shortcut)."""
  c2 = jnp.dot(p_ref[...], w3_ref[...], preferred_element_type=jnp.float32)
  c2 = jnp.maximum(c2 + b3_ref[...], 0.0)
  c3 = jnp.dot(c2.astype(wb_ref.dtype), wb_ref[...],
               preferred_element_type=jnp.float32) + bb_ref[...]
  o_ref[...] = jnp.maximum(c3 + x_ref[...].astype(jnp.float32),
                           0.0).astype(o_ref.dtype)


# ----------------------------------------------------------------------------
# pallas_call wrappers
# ----------------------------------------------------------------------------
def _stage1(data, wa, ba, *, tile_n):
  n, cin = data.shape
  cb = wa.shape[1]
  return pl.pallas_call(
      _conv1x1a_kernel,
      out_shape=jax.ShapeDtypeStruct((n, cb), data.dtype),
      grid_spec=pltpu.PrefetchScalarGridSpec(
          num_scalar_prefetch=0,
          grid=(n // tile_n,),
          in_specs=[
              pl.BlockSpec((tile_n, cin), lambda i: (i, 0)),
              pl.BlockSpec((cin, cb), lambda i: (0, 0)),
              pl.BlockSpec((1, cb), lambda i: (0, 0)),
          ],
          out_specs=pl.BlockSpec((tile_n, cb), lambda i: (i, 0)),
      ),
      compiler_params=pltpu.CompilerParams(
          dimension_semantics=("parallel",),
          vmem_limit_bytes=_VMEM_LIMIT),
  )(data, wa, ba)


def _stage2_proj(patches, x, w3, b3, wb, bb, wc, bc, *, tile_n):
  n, k3 = patches.shape
  cin = x.shape[1]
  cb = w3.shape[1]
  cout = wb.shape[1]
  return pl.pallas_call(
      _stage2_proj_kernel,
      out_shape=jax.ShapeDtypeStruct((n, cout), patches.dtype),
      grid_spec=pltpu.PrefetchScalarGridSpec(
          num_scalar_prefetch=0,
          grid=(n // tile_n,),
          in_specs=[
              pl.BlockSpec((tile_n, k3), lambda i: (i, 0)),
              pl.BlockSpec((tile_n, cin), lambda i: (i, 0)),
              pl.BlockSpec((k3, cb), lambda i: (0, 0)),
              pl.BlockSpec((1, cb), lambda i: (0, 0)),
              pl.BlockSpec((cb, cout), lambda i: (0, 0)),
              pl.BlockSpec((1, cout), lambda i: (0, 0)),
              pl.BlockSpec((cin, cout), lambda i: (0, 0)),
              pl.BlockSpec((1, cout), lambda i: (0, 0)),
          ],
          out_specs=pl.BlockSpec((tile_n, cout), lambda i: (i, 0)),
      ),
      compiler_params=pltpu.CompilerParams(
          dimension_semantics=("parallel",),
          vmem_limit_bytes=_VMEM_LIMIT),
  )(patches, x, w3, b3, wb, bb, wc, bc)


def _stage2_identity(patches, x, w3, b3, wb, bb, *, tile_n):
  n, k3 = patches.shape
  cin = x.shape[1]
  cb = w3.shape[1]
  cout = wb.shape[1]
  return pl.pallas_call(
      _stage2_identity_kernel,
      out_shape=jax.ShapeDtypeStruct((n, cout), patches.dtype),
      grid_spec=pltpu.PrefetchScalarGridSpec(
          num_scalar_prefetch=0,
          grid=(n // tile_n,),
          in_specs=[
              pl.BlockSpec((tile_n, k3), lambda i: (i, 0)),
              pl.BlockSpec((tile_n, cin), lambda i: (i, 0)),
              pl.BlockSpec((k3, cb), lambda i: (0, 0)),
              pl.BlockSpec((1, cb), lambda i: (0, 0)),
              pl.BlockSpec((cb, cout), lambda i: (0, 0)),
              pl.BlockSpec((1, cout), lambda i: (0, 0)),
          ],
          out_specs=pl.BlockSpec((tile_n, cout), lambda i: (i, 0)),
      ),
      compiler_params=pltpu.CompilerParams(
          dimension_semantics=("parallel",),
          vmem_limit_bytes=_VMEM_LIMIT),
  )(patches, x, w3, b3, wb, bb)


# ----------------------------------------------------------------------------
# Octree helpers (glue in plain JAX)
# ----------------------------------------------------------------------------
def octree_neighbor_gather(x, neigh):
  """x: (N, C), neigh: (N, 27) int32; -1 == empty neighbour -> zeros.

  Returns (N, 27*C); the heavy matmul consuming this runs in the Pallas kernel.
  """
  n, c = x.shape
  k = neigh.shape[1]
  idx = jnp.clip(neigh, 0, n - 1)
  g = x[idx]                                                   # (N, 27, C)
  g = jnp.where((neigh >= 0)[..., None], g, jnp.zeros((), x.dtype))
  return g.reshape(n, k * c)


def build_synthetic_neigh(n_nodes):
  """Deterministic neighbour table: neigh[i, k] = i + (k - 13), OOB -> -1."""
  i = jnp.arange(n_nodes, dtype=jnp.int32)[:, None]
  k = jnp.arange(27, dtype=jnp.int32)[None, :]
  nb = i + (k - 13)
  return jnp.where((nb >= 0) & (nb < n_nodes), nb, -1)


# ----------------------------------------------------------------------------
# Parameter construction / folding / padding
# ----------------------------------------------------------------------------
def fold_bn(gamma, beta, mean, var, eps=1e-5):
  scale = gamma / jnp.sqrt(var + eps)
  shift = beta - mean * scale
  return scale, shift


def init_params(key, in_channels, out_channels, bottleneck=4):
  cb = out_channels // bottleneck
  ks = jax.random.split(key, 8)

  def dense(k, fan_in, shape):
    return jax.random.normal(k, shape, jnp.float32) / jnp.sqrt(fan_in)

  def bn(k, c):
    k1, k2, k3, k4 = jax.random.split(k, 4)
    gamma = 1.0 + 0.1 * jax.random.normal(k1, (c,), jnp.float32)
    beta = 0.1 * jax.random.normal(k2, (c,), jnp.float32)
    mean = 0.1 * jax.random.normal(k3, (c,), jnp.float32)
    var = 1.0 + 0.1 * jax.random.uniform(k4, (c,), jnp.float32)
    return fold_bn(gamma, beta, mean, var)

  params = {
      "w_a": dense(ks[0], in_channels, (in_channels, cb)),      # Conv1x1BnRelu
      "bn_a": bn(ks[1], cb),
      "w_3": dense(ks[2], 27 * cb, (27, cb, cb)),               # OctreeConvBnRelu
      "bn_3": bn(ks[3], cb),
      "w_b": dense(ks[4], cb, (cb, out_channels)),              # Conv1x1Bn
      "bn_b": bn(ks[5], out_channels),
  }
  if in_channels != out_channels:
    params["w_c"] = dense(ks[6], in_channels, (in_channels, out_channels))
    params["bn_c"] = bn(ks[7], out_channels)
  return params, cb


def prepare_kernel_params(params, in_channels, out_channels, cb,
                          dtype=ACT_DTYPE):
  """Fold BN scales into the weights; pad only where it pays off.

  Padding policy: the final output channels go to a 128-lane multiple
  (lane-dense unmasked stores); the bottleneck channel cb and the input channel
  only go to a sublane multiple of 8, so the gathered patches and conv3x3 MXU
  work stay small.  For the identity shortcut the input is padded to the output
  width so the residual add lines up.
  """
  cout_p = _round_up(out_channels, LANE)
  cb_p = _round_up(cb, 8)
  cin_p = cout_p if in_channels == out_channels else _round_up(in_channels, 8)

  def fold_pad(w, bn_, rows_p, cols_p):
    scale, shift = bn_
    wf = w * scale[None, :]
    wf = jnp.pad(wf, ((0, rows_p - wf.shape[0]), (0, cols_p - wf.shape[1])))
    b = jnp.pad(shift, (0, cols_p - shift.shape[0]))[None, :]
    return wf.astype(dtype), b.astype(jnp.float32)

  kp = {}
  kp["w_a"], kp["b_a"] = fold_pad(params["w_a"], params["bn_a"], cin_p, cb_p)
  # Conv3x3 weight: (27, cb, cb) -> (27, cb_p, cb_p) -> (27*cb_p, cb_p) so it
  # matches the layout of the gathered, channel-padded patches.
  s3, sh3 = params["bn_3"]
  w3 = params["w_3"] * s3[None, None, :]
  w3p = jnp.zeros((27, cb_p, cb_p), jnp.float32).at[:, :cb, :cb].set(w3)
  kp["w_3"] = w3p.reshape(27 * cb_p, cb_p).astype(dtype)
  kp["b_3"] = jnp.pad(sh3, (0, cb_p - cb))[None, :].astype(jnp.float32)
  kp["w_b"], kp["b_b"] = fold_pad(params["w_b"], params["bn_b"], cb_p, cout_p)
  if "w_c" in params:
    kp["w_c"], kp["b_c"] = fold_pad(params["w_c"], params["bn_c"], cin_p, cout_p)
  return kp


# ----------------------------------------------------------------------------
# Full block forward (stride == 1)
# ----------------------------------------------------------------------------
def octree_res_block_forward(kparams, data, neigh, *, out_channels, tile_n=256):
  assert tile_n % 8 == 0
  n, cin = data.shape
  cin_p = kparams["w_a"].shape[0]
  n_pad = _round_up(n, tile_n)
  has_proj = "w_c" in kparams

  data_p = jnp.pad(data, ((0, n_pad - n), (0, cin_p - cin))).astype(ACT_DTYPE)
  neigh_p = jnp.pad(neigh, ((0, n_pad - n), (0, 0)), constant_values=-1)

  # Stage 1: conv1x1a + BN + ReLU.
  conv1 = _stage1(data_p, kparams["w_a"], kparams["b_a"], tile_n=tile_n)

  # 27-neighbour gather (XLA); heavy matmuls consuming it are in stage 2.
  patches = octree_neighbor_gather(conv1, neigh_p)          # (n_pad, 27*cb_p)

  # Stage 2: conv3x3 -> conv1x1b -> shortcut add -> ReLU, all fused.
  if has_proj:
    out = _stage2_proj(patches, data_p, kparams["w_3"], kparams["b_3"],
                       kparams["w_b"], kparams["b_b"],
                       kparams["w_c"], kparams["b_c"], tile_n=tile_n)
  else:
    out = _stage2_identity(patches, data_p, kparams["w_3"], kparams["b_3"],
                           kparams["w_b"], kparams["b_b"], tile_n=tile_n)
  return out[:n, :out_channels].astype(data.dtype)


# ----------------------------------------------------------------------------
# Pure-JAX reference (mirrors the kernel's bf16 rounding points)
# ----------------------------------------------------------------------------
def reference_forward(params, data, neigh, in_channels, out_channels):
  f32, bf16 = jnp.float32, jnp.bfloat16
  hp = jax.lax.Precision.HIGHEST

  def rt(a):  # round-trip through bf16
    return a.astype(bf16).astype(f32)

  def fold(w, bn_):
    scale, shift = bn_
    return rt(w * scale[None, :]), shift

  x = rt(data)
  wa, ba = fold(params["w_a"], params["bn_a"])
  c1 = rt(jnp.maximum(jnp.dot(x, wa, precision=hp) + ba, 0.0))

  n = data.shape[0]
  cb = params["w_a"].shape[1]
  idx = jnp.clip(neigh, 0, n - 1)
  g = jnp.where((neigh >= 0)[..., None], c1[idx], 0.0)
  patches = g.reshape(n, 27 * cb)

  s3, sh3 = params["bn_3"]
  w3 = rt((params["w_3"] * s3[None, None, :]).reshape(27 * cb, cb))
  c2 = jnp.maximum(jnp.dot(patches, w3, precision=hp) + sh3, 0.0)

  wb, bb = fold(params["w_b"], params["bn_b"])
  c3 = jnp.dot(rt(c2), wb, precision=hp) + bb

  if in_channels != out_channels:
    wc, bc = fold(params["w_c"], params["bn_c"])
    sc = jnp.dot(x, wc, precision=hp) + bc
  else:
    sc = x
  return rt(jnp.maximum(c3 + sc, 0.0))


# ----------------------------------------------------------------------------
if __name__ == "__main__":
  N_NODES = 512          # number of octree nodes at this depth
  IN_CHANNELS = 32
  OUT_CHANNELS = 64
  BOTTLENECK = 4
  TILE_N = 256           # 2 grid steps at N=512 -> both megacore TCs get work

  key = jax.random.PRNGKey(0)
  k_data, k_params = jax.random.split(key)

  data = jax.random.normal(k_data, (N_NODES, IN_CHANNELS), jnp.float32)
  neigh = build_synthetic_neigh(N_NODES)
  params, cb = init_params(k_params, IN_CHANNELS, OUT_CHANNELS, BOTTLENECK)
  kparams = prepare_kernel_params(params, IN_CHANNELS, OUT_CHANNELS, cb)

  fwd = jax.jit(functools.partial(
      octree_res_block_forward, out_channels=OUT_CHANNELS, tile_n=TILE_N))
  out = jax.block_until_ready(fwd(kparams, data, neigh))

  ref = reference_forward(params, data, neigh, IN_CHANNELS, OUT_CHANNELS)
  assert out.shape == (N_NODES, OUT_CHANNELS)
  max_err = float(jnp.max(jnp.abs(out - ref)))
  assert jnp.allclose(out, ref, atol=1e-2, rtol=1e-2), (
      f"mismatch vs reference (max abs err {max_err:.4g})")

  print("KERNEL_OK")
</pallas_src>

<mosaic_0001>
module attributes {stable_mosaic.version = 11 : i64} {
  func.func @_conv1x1a_kernel(%arg0: i32, %arg1: memref<256x32xbf16, #tpu.memory_space<vmem>>, %arg2: memref<32x16xbf16, #tpu.memory_space<vmem>>, %arg3: memref<1x16xf32, #tpu.memory_space<vmem>>, %arg4: memref<256x16xbf16, #tpu.memory_space<vmem>>) attributes {dimension_semantics = [#tpu.dimension_semantics<parallel>], iteration_bounds = array<i64: 2>, scalar_prefetch = 0 : i64, scratch_operands = 0 : i64, tpu.core_type = #tpu.core_type<tc>, window_params = [{transform_indices = @transform_0, window_bounds = array<i64: 256, 32>}, {pipeline_mode = #tpu.pipeline_mode<synchronous>, transform_indices = @transform_1, window_bounds = array<i64: 32, 16>}, {pipeline_mode = #tpu.pipeline_mode<synchronous>, transform_indices = @transform_2, window_bounds = array<i64: 1, 16>}, {transform_indices = @transform_3, window_bounds = array<i64: 256, 16>}]} {
    %c0 = arith.constant 0 : index
    %c0_0 = arith.constant 0 : index
    %0 = vector.load %arg1[%c0, %c0_0] : memref<256x32xbf16, #tpu.memory_space<vmem>>, vector<256x32xbf16>
    %c0_1 = arith.constant 0 : index
    %c0_2 = arith.constant 0 : index
    %1 = vector.load %arg2[%c0_1, %c0_2] : memref<32x16xbf16, #tpu.memory_space<vmem>>, vector<32x16xbf16>
    %cst = arith.constant dense<0.000000e+00> : vector<256x16xf32>
    %2 = tpu.matmul %0, %1, %cst {dimension_numbers = #tpu.dot_dimension_numbers<[1], [0], [0], [1], [0, 0, 1, 1], [], []>} : vector<256x32xbf16>, vector<32x16xbf16>, vector<256x16xf32> -> vector<256x16xf32>
    %c0_3 = arith.constant 0 : index
    %c0_4 = arith.constant 0 : index
    %3 = vector.load %arg3[%c0_3, %c0_4] : memref<1x16xf32, #tpu.memory_space<vmem>>, vector<1x16xf32>
    %4 = vector.broadcast %3 : vector<1x16xf32> to vector<256x16xf32>
    %5 = arith.addf %2, %4 : vector<256x16xf32>
    %cst_5 = arith.constant 0.000000e+00 : f32
    %6 = vector.broadcast %cst_5 : f32 to vector<256x16xf32>
    %7 = arith.maximumf %5, %6 : vector<256x16xf32>
    %8 = arith.truncf %7 : vector<256x16xf32> to vector<256x16xbf16>
    %c0_6 = arith.constant 0 : index
    %c0_7 = arith.constant 0 : index
    %9 = vector.load %arg4[%c0_6, %c0_7] : memref<256x16xbf16, #tpu.memory_space<vmem>>, vector<256x16xbf16>
    tpu.vector_store %arg4[%c0_6, %c0_7], %8 {strides = array<i32>} : memref<256x16xbf16, #tpu.memory_space<vmem>>, vector<256x16xbf16>,
    return
  }
  func.func @transform_0(%arg0: i32) -> (i32, i32) {
    %c0_i32 = arith.constant 0 : i32
    %c0_i32_0 = arith.constant 0 : i32
    return %arg0, %c0_i32 : i32, i32
  }
  func.func @transform_1(%arg0: i32) -> (i32, i32) {
    %c0_i32 = arith.constant 0 : i32
    %c0_i32_0 = arith.constant 0 : i32
    %c0_i32_1 = arith.constant 0 : i32
    return %c0_i32, %c0_i32_0 : i32, i32
  }
  func.func @transform_2(%arg0: i32) -> (i32, i32) {
    %c0_i32 = arith.constant 0 : i32
    %c0_i32_0 = arith.constant 0 : i32
    %c0_i32_1 = arith.constant 0 : i32
    return %c0_i32, %c0_i32_0 : i32, i32
  }
  func.func @transform_3(%arg0: i32) -> (i32, i32) {
    %c0_i32 = arith.constant 0 : i32
    %c0_i32_0 = arith.constant 0 : i32
    return %arg0, %c0_i32 : i32, i32
  }
}

module attributes {stable_mosaic.version = 11 : i64} {
  func.func @_stage2_proj_kernel(%arg0: i32, %arg1: memref<256x432xbf16, #tpu.memory_space<vmem>>, %arg2: memref<256x32xbf16, #tpu.memory_space<vmem>>, %arg3: memref<432x16xbf16, #tpu.memory_space<vmem>>, %arg4: memref<1x16xf32, #tpu.memory_space<vmem>>, %arg5: memref<16x128xbf16, #tpu.memory_space<vmem>>, %arg6: memref<1x128xf32, #tpu.memory_space<vmem>>, %arg7: memref<32x128xbf16, #tpu.memory_space<vmem>>, %arg8: memref<1x128xf32, #tpu.memory_space<vmem>>, %arg9: memref<256x128xbf16, #tpu.memory_space<vmem>>) attributes {dimension_semantics = [#tpu.dimension_semantics<parallel>], iteration_bounds = array<i64: 2>, scalar_prefetch = 0 : i64, scratch_operands = 0 : i64, tpu.core_type = #tpu.core_type<tc>, window_params = [{transform_indices = @transform_0, window_bounds = array<i64: 256, 432>}, {transform_indices = @transform_1, window_bounds = array<i64: 256, 32>}, {pipeline_mode = #tpu.pipeline_mode<synchronous>, transform_indices = @transform_2, window_bounds = array<i64: 432, 16>}, {pipeline_mode = #tpu.pipeline_mode<synchronous>, transform_indices = @transform_3, window_bounds = array<i64: 1, 16>}, {pipeline_mode = #tpu.pipeline_mode<synchronous>, transform_indices = @transform_4, window_bounds = array<i64: 16, 128>}, {pipeline_mode = #tpu.pipeline_mode<synchronous>, transform_indices = @transform_5, window_bounds = array<i64: 1, 128>}, {pipeline_mode = #tpu.pipeline_mode<synchronous>, transform_indices = @transform_6, window_bounds = array<i64: 32, 128>}, {pipeline_mode = #tpu.pipeline_mode<synchronous>, transform_indices = @transform_7, window_bounds = array<i64: 1, 128>}, {transform_indices = @transform_8, window_bounds = array<i64: 256, 128>}]} {
    %c0 = arith.constant 0 : index
    %c0_0 = arith.constant 0 : index
    %0 = vector.load %arg1[%c0, %c0_0] : memref<256x432xbf16, #tpu.memory_space<vmem>>, vector<256x432xbf16>
    %c0_1 = arith.constant 0 : index
    %c0_2 = arith.constant 0 : index
    %1 = vector.load %arg3[%c0_1, %c0_2] : memref<432x16xbf16, #tpu.memory_space<vmem>>, vector<432x16xbf16>
    %cst = arith.constant dense<0.000000e+00> : vector<256x16xf32>
    %2 = tpu.matmul %0, %1, %cst {dimension_numbers = #tpu.dot_dimension_numbers<[1], [0], [0], [1], [0, 0, 1, 1], [], []>} : vector<256x432xbf16>, vector<432x16xbf16>, vector<256x16xf32> -> vector<256x16xf32>
    %c0_3 = arith.constant 0 : index
    %c0_4 = arith.constant 0 : index
    %3 = vector.load %arg4[%c0_3, %c0_4] : memref<1x16xf32, #tpu.memory_space<vmem>>, vector<1x16xf32>
    %4 = vector.broadcast %3 : vector<1x16xf32> to vector<256x16xf32>
    %5 = arith.addf %2, %4 : vector<256x16xf32>
    %cst_5 = arith.constant 0.000000e+00 : f32
    %6 = vector.broadcast %cst_5 : f32 to vector<256x16xf32>
    %7 = arith.maximumf %5, %6 : vector<256x16xf32>
    %8 = arith.truncf %7 : vector<256x16xf32> to vector<256x16xbf16>
    %c0_6 = arith.constant 0 : index
    %c0_7 = arith.constant 0 : index
    %9 = vector.load %arg5[%c0_6, %c0_7] : memref<16x128xbf16, #tpu.memory_space<vmem>>, vector<16x128xbf16>
    %cst_8 = arith.constant dense<0.000000e+00> : vector<256x128xf32>
    %10 = tpu.matmul %8, %9, %cst_8 {dimension_numbers = #tpu.dot_dimension_numbers<[1], [0], [0], [1], [0, 0, 1, 1], [], []>} : vector<256x16xbf16>, vector<16x128xbf16>, vector<256x128xf32> -> vector<256x128xf32>
    %c0_9 = arith.constant 0 : index
    %c0_10 = arith.constant 0 : index
    %11 = vector.load %arg6[%c0_9, %c0_10] : memref<1x128xf32, #tpu.memory_space<vmem>>, vector<1x128xf32>
    %12 = vector.broadcast %11 : vector<1x128xf32> to vector<256x128xf32>
    %13 = arith.addf %10, %12 : vector<256x128xf32>
    %c0_11 = arith.constant 0 : index
    %c0_12 = arith.constant 0 : index
    %14 = vector.load %arg2[%c0_11, %c0_12] : memref<256x32xbf16, #tpu.memory_space<vmem>>, vector<256x32xbf16>
    %c0_13 = arith.constant 0 : index
    %c0_14 = arith.constant 0 : index
    %15 = vector.load %arg7[%c0_13, %c0_14] : memref<32x128xbf16, #tpu.memory_space<vmem>>, vector<32x128xbf16>
    %cst_15 = arith.constant dense<0.000000e+00> : vector<256x128xf32>
    %16 = tpu.matmul %14, %15, %cst_15 {dimension_numbers = #tpu.dot_dimension_numbers<[1], [0], [0], [1], [0, 0, 1, 1], [], []>} : vector<256x32xbf16>, vector<32x128xbf16>, vector<256x128xf32> -> vector<256x128xf32>
    %c0_16 = arith.constant 0 : index
    %c0_17 = arith.constant 0 : index
    %17 = vector.load %arg8[%c0_16, %c0_17] : memref<1x128xf32, #tpu.memory_space<vmem>>, vector<1x128xf32>
    %18 = vector.broadcast %17 : vector<1x128xf32> to vector<256x128xf32>
    %19 = arith.addf %16, %18 : vector<256x128xf32>
    %20 = arith.addf %13, %19 : vector<256x128xf32>
    %cst_18 = arith.constant 0.000000e+00 : f32
    %21 = vector.broadcast %cst_18 : f32 to vector<256x128xf32>
    %22 = arith.maximumf %20, %21 : vector<256x128xf32>
    %23 = arith.truncf %22 : vector<256x128xf32> to vector<256x128xbf16>
    %c0_19 = arith.constant 0 : index
    %c0_20 = arith.constant 0 : index
    %24 = vector.load %arg9[%c0_19, %c0_20] : memref<256x128xbf16, #tpu.memory_space<vmem>>, vector<256x128xbf16>
    tpu.vector_store %arg9[%c0_19, %c0_20], %23 {strides = array<i32>} : memref<256x128xbf16, #tpu.memory_space<vmem>>, vector<256x128xbf16>,
    return
  }
  func.func @transform_0(%arg0: i32) -> (i32, i32) {
    %c0_i32 = arith.constant 0 : i32
    %c0_i32_0 = arith.constant 0 : i32
    return %arg0, %c0_i32 : i32, i32
  }
  func.func @transform_1(%arg0: i32) -> (i32, i32) {
    %c0_i32 = arith.constant 0 : i32
    %c0_i32_0 = arith.constant 0 : i32
    return %arg0, %c0_i32 : i32, i32
  }
  func.func @transform_2(%arg0: i32) -> (i32, i32) {
    %c0_i32 = arith.constant 0 : i32
    %c0_i32_0 = arith.constant 0 : i32
    %c0_i32_1 = arith.constant 0 : i32
    return %c0_i32, %c0_i32_0 : i32, i32
  }
  func.func @transform_3(%arg0: i32) -> (i32, i32) {
    %c0_i32 = arith.constant 0 : i32
    %c0_i32_0 = arith.constant 0 : i32
    %c0_i32_1 = arith.constant 0 : i32
    return %c0_i32, %c0_i32_0 : i32, i32
  }
  func.func @transform_4(%arg0: i32) -> (i32, i32) {
    %c0_i32 = arith.constant 0 : i32
    %c0_i32_0 = arith.constant 0 : i32
    %c0_i32_1 = arith.constant 0 : i32
    return %c0_i32, %c0_i32_0 : i32, i32
  }
  func.func @transform_5(%arg0: i32) -> (i32, i32) {
    %c0_i32 = arith.constant 0 : i32
    %c0_i32_0 = arith.constant 0 : i32
    %c0_i32_1 = arith.constant 0 : i32
    return %c0_i32, %c0_i32_0 : i32, i32
  }
  func.func @transform_6(%arg0: i32) -> (i32, i32) {
    %c0_i32 = arith.constant 0 : i32
    %c0_i32_0 = arith.constant 0 : i32
    %c0_i32_1 = arith.constant 0 : i32
    return %c0_i32, %c0_i32_0 : i32, i32
  }
  func.func @transform_7(%arg0: i32) -> (i32, i32) {
    %c0_i32 = arith.constant 0 : i32
    %c0_i32_0 = arith.constant 0 : i32
    %c0_i32_1 = arith.constant 0 : i32
    return %c0_i32, %c0_i32_0 : i32, i32
  }
  func.func @transform_8(%arg0: i32) -> (i32, i32) {
    %c0_i32 = arith.constant 0 : i32
    %c0_i32_0 = arith.constant 0 : i32
    return %arg0, %c0_i32 : i32, i32
  }
}

</mosaic_0001>

<llo_original>
// kernel: octree_res_block_forward.2
$region0: #{octree_res_block_forward.2}
  #allocation0 [shape = 'u32[]', space=smem, size = 0x4, offset = 0x4, fixed_abs, tag = 'smem constant byte address 0x4 - core index']
  #allocation1 [shape = 'u32[144,128]{1,0:T(1,128)}', space=vmem, size = 0x12000, scoped, tag = 'internal scratch']
  %s0 = inlined_call_operand.vmem [shape: bf16[512,32], index: 0, kind: input, shape index: {}]
  %s1 = inlined_call_operand.vmem [shape: bf16[32,16], index: 1, kind: input, shape index: {}]
  %s2 = inlined_call_operand.hbm [shape: f32[1,16], index: 2, kind: input, shape index: {}]
  %s3 = inlined_call_operand.vmem [shape: bf16[512,16], index: 3, kind: output, shape index: {}]
  %s4 = sld [smem:[#allocation0]]
  $region49: #{octree_res_block_forward.2} parent=0
    _
  %s6 = ssub.s32 1, %s4
  %s7 = scalar_select 0, %s6, %s4
  $region1: #{octree_res_block_forward.2} parent=0
    #allocation2 [shape = 'u8[512]{0}', space=vmem, size = 0x400, scoped, tag = 'input window, operand 2, single buffered']
    #allocation3 [shape = 's32[2]{0}', space=sflag, size = 0x8, scoped, tag = 'scoped memory for octree_res_block_forward.2']
    %8 = vsyncpa [#allocation3], 0
    loop: start=0, step=1, limit=4
    $region2: #{octree_res_block_forward.2} parent=1 // loop_pre_header
      _
    $region3: #{octree_res_block_forward.2} parent=1 // loop_header
      %s10 = sphi 0, %s14
      %p11 = scmp.ge.s32.totalorder %s10, 4
      %s20 = sphi 0, %s22
      %s23 = sphi 0, %s20
      %s24 = sphi 0, %s23
      %s40 = sphi 0, %s24
      %s44 = sphi 0, %s44
      %s46 = sphi 0, %s44
      %s47 = sphi 0, %s46
      %s61 = sphi 0, %s47
      %s65 = sphi 0, %s65
      %s67 = sphi 0, %s65
      %s68 = sphi 0, %s67
      %s82 = sphi 0, %s68
      %s88 = sphi 0, %s90
      %s91 = sphi 0, %s88
      %s92 = sphi 0, %s91
      %s108 = sphi 0, %s92
    $region4: #{octree_res_block_forward.2} parent=1 // loop_header_branch
      %13 = sbr.rel (%p11) target = $region8
    $region5: #{octree_res_block_forward.2} parent=1 // loop_body
      %s15 = ssub.s32 %s10, 1
      %s16 = ssub.s32 %s10, 2
      %s17 = sadd.s32 %s10, 1
      %s18 = ssub.s32 %s10, %s17
      %p19 = scmp.eq.s32.totalorder %s18, 0
      %s21 = sadd.s32 %s20, 1
      %s22 = scalar_select %p19, %s20, %s21
      %p25 = pneg %p19
      %p26 = scmp.eq.s32.totalorder %s10, 1
      %p27 = por %p25, %p26
      %p28 = scmp.ne.s32.totalorder %s20, %s23
      %p29 = scmp.eq.s32.totalorder %s10, 0
      %p30 = por %p28, %p29
      %p31 = scmp.ne.s32.totalorder %s20, %s23
      %p32 = scmp.eq.s32.totalorder %s15, 1
      %p33 = por %p31, %p32
      %p34 = scmp.ne.s32.totalorder %s23, %s24
      %p35 = scmp.eq.s32.totalorder %s15, 0
      %p36 = por %p34, %p35
      %p37 = scmp.ne.s32.totalorder %s23, %s24
      %p38 = scmp.eq.s32.totalorder %s16, 1
      %p39 = por %p37, %p38
      %p41 = scmp.ne.s32.totalorder %s24, %s40
      %p42 = scmp.eq.s32.totalorder %s16, 0
      %p43 = por %p41, %p42
      %s45 = sadd.s32 %s44, 1
      %p48 = scmp.eq.s32.totalorder %s10, 1
      %p49 = scmp.ne.s32.totalorder %s44, %s46
      %p50 = scmp.eq.s32.totalorder %s10, 0
      %p51 = por %p49, %p50
      %p52 = scmp.ne.s32.totalorder %s44, %s46
      %p53 = scmp.eq.s32.totalorder %s15, 1
      %p54 = por %p52, %p53
      %p55 = scmp.ne.s32.totalorder %s46, %s47
      %p56 = scmp.eq.s32.totalorder %s15, 0
      %p57 = por %p55, %p56
      %p58 = scmp.ne.s32.totalorder %s46, %s47
      %p59 = scmp.eq.s32.totalorder %s16, 1
      %p60 = por %p58, %p59
      %p62 = scmp.ne.s32.totalorder %s47, %s61
      %p63 = scmp.eq.s32.totalorder %s16, 0
      %p64 = por %p62, %p63
      %s66 = sadd.s32 %s65, 1
      %p69 = scmp.eq.s32.totalorder %s10, 1
      %p70 = scmp.ne.s32.totalorder %s65, %s67
      %p71 = scmp.eq.s32.totalorder %s10, 0
      %p72 = por %p70, %p71
      %p73 = scmp.ne.s32.totalorder %s65, %s67
      %p74 = scmp.eq.s32.totalorder %s15, 1
      %p75 = por %p73, %p74
      %p76 = scmp.ne.s32.totalorder %s67, %s68
      %p77 = scmp.eq.s32.totalorder %s15, 0
      %p78 = por %p76, %p77
      %p79 = scmp.ne.s32.totalorder %s67, %s68
      %p80 = scmp.eq.s32.totalorder %s16, 1
      %p81 = por %p79, %p80
      %p83 = scmp.ne.s32.totalorder %s68, %s82
      %p84 = scmp.eq.s32.totalorder %s16, 0
      %p85 = por %p83, %p84
      %s86 = ssub.s32 %s10, %s17
      %p87 = scmp.eq.s32.totalorder %s86, 0
      %s89 = sadd.s32 %s88, 1
      %s90 = scalar_select %p87, %s88, %s89
      %p93 = pneg %p87
      %p94 = scmp.eq.s32.totalorder %s10, 1
      %p95 = por %p93, %p94
      %p96 = scmp.ne.s32.totalorder %s88, %s91
      %p97 = scmp.eq.s32.totalorder %s10, 0
      %p98 = por %p96, %p97
      %p99 = scmp.ne.s32.totalorder %s88, %s91
      %p100 = scmp.eq.s32.totalorder %s15, 1
      %p101 = por %p99, %p100
      %p102 = scmp.ne.s32.totalorder %s91, %s92
      %p103 = scmp.eq.s32.totalorder %s15, 0
      %p104 = por %p102, %p103
      %p105 = scmp.ne.s32.totalorder %s91, %s92
      %p106 = scmp.eq.s32.totalorder %s16, 1
      %p107 = por %p105, %p106
      %p109 = scmp.ne.s32.totalorder %s92, %s108
      %p110 = scmp.eq.s32.totalorder %s16, 0
      %p111 = por %p109, %p110
      %p112 = scmp.le.s32.totalorder 1, %s10
      %p113 = scmp.lt.s32.totalorder %s10, 3
      %p114 = pnand %p112, %p113
      %p115 = pneg %p114
      // Predicated region
      $region9: #{octree_res_block_forward.2} parent=5 // pred_check
        _
      $region10: #{octree_res_block_forward.2} parent=5 // pred_check_branch
        %117 = sbr.rel (%p114) target = $region12
      $region11: #{octree_res_block_forward.2} parent=5 // pred_region
        %s118 = ssub.s32 %s10, 1
        // Predicated region
        $region13: #{octree_res_block_forward.2} parent=11 // pred_check
          %p119 = pneg %p57
        $region14: #{octree_res_block_forward.2} parent=11 // pred_check_branch
          %121 = sbr.rel (%p119) target = $region16
        $region15: #{octree_res_block_forward.2} parent=11 // pred_region
          _
        $region16: #{octree_res_block_forward.2} parent=11 // pred_fallthru
          _
        // Predicated region
        $region17: #{octree_res_block_forward.2} parent=11 // pred_check
          %p122 = pneg %p78
        $region18: #{octree_res_block_forward.2} parent=11 // pred_check_branch
          %124 = sbr.rel (%p122) target = $region20
        $region19: #{octree_res_block_forward.2} parent=11 // pred_region
          %s126 = ssub.s32 16, 16
          %127 = vsyncadd [#allocation3], %s126
          %s129 = sshll.u32 [#allocation2], 4
          %s130 = int_to_ptr.vmem [resolvable:$true] %s129
          %132 = dma.hbm_to_vmem [thread:$0]  %s2, 16, %s130, [#allocation3]
        $region20: #{octree_res_block_forward.2} parent=11 // pred_fallthru
          _
      $region12: #{octree_res_block_forward.2} parent=5 // pred_fallthru
        _
      %p133 = scmp.lt.s32.totalorder %s10, 2
      // Predicated region
      $region21: #{octree_res_block_forward.2} parent=5 // pred_check
        %p134 = pneg %p133
      $region22: #{octree_res_block_forward.2} parent=5 // pred_check_branch
        %136 = sbr.rel (%p134) target = $region24
      $region23: #{octree_res_block_forward.2} parent=5 // pred_region
        // Predicated region
        $region25: #{octree_res_block_forward.2} parent=23 // pred_check
          %p137 = pneg %p30
        $region26: #{octree_res_block_forward.2} parent=23 // pred_check_branch
          %139 = sbr.rel (%p137) target = $region28
        $region27: #{octree_res_block_forward.2} parent=23 // pred_region
          %s140 = smul.u32 32, %s10
          %p141 = scmp.lt.s32.totalorder %s140, 63
          %s142 = scalar_select %p141, %s140, 63
          %s143 = smul.addr %s142, 4
          %s144 = scalar_lea.vmem %s0, %s143
          %s145 = smul.u32 32, %s10
        $region28: #{octree_res_block_forward.2} parent=23 // pred_fallthru
          _
      $region24: #{octree_res_block_forward.2} parent=5 // pred_fallthru
        _
      %p146 = scmp.le.s32.totalorder 1, %s10
      %p147 = scmp.lt.s32.totalorder %s10, 3
      %p148 = pnand %p146, %p147
      %p149 = pneg %p148
      // Predicated region
      $region29: #{octree_res_block_forward.2} parent=5 // pred_check
        _
      $region30: #{octree_res_block_forward.2} parent=5 // pred_check_branch
        %151 = sbr.rel (%p148) target = $region32
      $region31: #{octree_res_block_forward.2} parent=5 // pred_region
        %s152 = ssub.s32 %s10, 1
        // Predicated region
        $region33: #{octree_res_block_forward.2} parent=31 // pred_check
          %p153 = pneg %p78
        $region34: #{octree_res_block_forward.2} parent=31 // pred_check_branch
          %155 = sbr.rel (%p153) target = $region36
        $region35: #{octree_res_block_forward.2} parent=31 // pred_region
          %156 = dma.done [#allocation3], 16
        $region36: #{octree_res_block_forward.2} parent=31 // pred_fallthru
          _
        %s157 = smul.u32 32, %s15
        %p158 = scmp.lt.s32.totalorder %s157, 63
        %s159 = scalar_select %p158, %s157, 63
        %s160 = smul.addr %s159, 4
        %s161 = scalar_lea.vmem %s0, %s160
        %p162 = pneg %p36
        %p163 = pneg %p33
        %p164 = pneg %p57
        %p165 = pneg %p54
        %p166 = pneg %p78
        %p167 = pneg %p75
        %p168 = pneg %p104
        %p169 = pneg %p101
        %s170 = smul.u32 32, %s15
        %p171 = scmp.lt.s32.totalorder %s170, 63
        %s172 = scalar_select %p171, %s170, 63
        %s173 = smul.addr %s172, 4
        %s174 = scalar_lea.vmem %s3, %s173
        %s175 = smul.u32 32, %s15
        %p176 = scmp.lt.s32.totalorder %s175, 63
        %s177 = scalar_select %p176, %s175, 63
        %s178 = smul.addr %s177, 4
        %s179 = scalar_lea.vmem %s0, %s178
        %s180 = smul.u32 32, %s15
        %s181 = smul.u32 32, %s15
        %p182 = scmp.lt.s32.totalorder %s181, 63
        %s183 = scalar_select %p182, %s181, 63
        %s184 = smul.addr %s183, 4
        %s185 = scalar_lea.vmem %s3, %s184
        %s186 = smul.u32 32, %s15
        %v188 = vld [vmem:[%s179] sm:$0xf]
        %v189 = vld [vmem:[%s179 + $0x4] sm:$0xf]
        %v190 = vld [vmem:[%s179 + $0x8] sm:$0xf]
        %v191 = vld [vmem:[%s179 + $0xc] sm:$0xf]
        %v192 = vld [vmem:[%s179 + $0x10] sm:$0xf]
        %v193 = vld [vmem:[%s179 + $0x14] sm:$0xf]
        %v194 = vld [vmem:[%s179 + $0x18] sm:$0xf]
        %v195 = vld [vmem:[%s179 + $0x1c] sm:$0xf]
        %v196 = vld [vmem:[%s179 + $0x20] sm:$0xf]
        %v197 = vld [vmem:[%s179 + $0x24] sm:$0xf]
        %v198 = vld [vmem:[%s179 + $0x28] sm:$0xf]
        %v199 = vld [vmem:[%s179 + $0x2c] sm:$0xf]
        %v200 = vld [vmem:[%s179 + $0x30] sm:$0xf]
        %v201 = vld [vmem:[%s179 + $0x34] sm:$0xf]
        %v202 = vld [vmem:[%s179 + $0x38] sm:$0xf]
        %v203 = vld [vmem:[%s179 + $0x3c] sm:$0xf]
        %v204 = vld [vmem:[%s179 + $0x40] sm:$0xf]
        %v205 = vld [vmem:[%s179 + $0x44] sm:$0xf]
        %v206 = vld [vmem:[%s179 + $0x48] sm:$0xf]
        %v207 = vld [vmem:[%s179 + $0x4c] sm:$0xf]
        %v208 = vld [vmem:[%s179 + $0x50] sm:$0xf]
        %v209 = vld [vmem:[%s179 + $0x54] sm:$0xf]
        %v210 = vld [vmem:[%s179 + $0x58] sm:$0xf]
        %v211 = vld [vmem:[%s179 + $0x5c] sm:$0xf]
        %v212 = vld [vmem:[%s179 + $0x60] sm:$0xf]
        %v213 = vld [vmem:[%s179 + $0x64] sm:$0xf]
        %v214 = vld [vmem:[%s179 + $0x68] sm:$0xf]
        %v215 = vld [vmem:[%s179 + $0x6c] sm:$0xf]
        %v216 = vld [vmem:[%s179 + $0x70] sm:$0xf]
        %v217 = vld [vmem:[%s179 + $0x74] sm:$0xf]
        %v218 = vld [vmem:[%s179 + $0x78] sm:$0xf]
        %v219 = vld [vmem:[%s179 + $0x7c] sm:$0xf]
        %v220 = vld [vmem:[%s1] sm:$0xf]
        %v221 = vld [vmem:[%s1 + $0x4] sm:$0xf]
        %v222 = vld [vmem:[%s1 + $0x8] sm:$0xf]
        %v223 = vld [vmem:[%s1 + $0xc] sm:$0xf]
        %v224 = vld [vmem:[#allocation2] sm:$0x1]
        %v226 = vlaneseq
        %v227 = vshrl.u32 %v226, 7
        %v228 = vsub.s32 0, %v227
        %v229 = vrot.slane %v224, %v228
        %v263 = vunpack.c.l.b16 %v188
        %v264 = vunpack.c.l.b16 %v189
        %v265 = vunpack.c.l.b16 %v190
        %v266 = vunpack.c.l.b16 %v191
        %v267 = vunpack.c.l.b16 %v192
        %v268 = vunpack.c.l.b16 %v193
        %v269 = vunpack.c.l.b16 %v194
        %v270 = vunpack.c.l.b16 %v195
        %v271 = vunpack.c.l.b16 %v196
        %v272 = vunpack.c.l.b16 %v197
        %v273 = vunpack.c.l.b16 %v198
        %v274 = vunpack.c.l.b16 %v199
        %v275 = vunpack.c.l.b16 %v200
        %v276 = vunpack.c.l.b16 %v201
        %v277 = vunpack.c.l.b16 %v202
        %v278 = vunpack.c.l.b16 %v203
        %v279 = vunpack.c.l.b16 %v204
        %v280 = vunpack.c.l.b16 %v205
        %v281 = vunpack.c.l.b16 %v206
        %v282 = vunpack.c.l.b16 %v207
        %v283 = vunpack.c.l.b16 %v208
        %v284 = vunpack.c.l.b16 %v209
        %v285 = vunpack.c.l.b16 %v210
        %v286 = vunpack.c.l.b16 %v211
        %v287 = vunpack.c.l.b16 %v212
        %v288 = vunpack.c.l.b16 %v213
        %v289 = vunpack.c.l.b16 %v214
        %v290 = vunpack.c.l.b16 %v215
        %v291 = vunpack.c.l.b16 %v216
        %v292 = vunpack.c.l.b16 %v217
        %v293 = vunpack.c.l.b16 %v218
        %v294 = vunpack.c.l.b16 %v219
        %v295 = vpack.c.b16 %v264, %v263
        %v296 = vpack.c.b16 %v266, %v265
        %v297 = vpack.c.b16 %v268, %v267
        %v298 = vpack.c.b16 %v270, %v269
        %v299 = vpack.c.b16 %v272, %v271
        %v300 = vpack.c.b16 %v274, %v273
        %v301 = vpack.c.b16 %v276, %v275
        %v302 = vpack.c.b16 %v278, %v277
        %v303 = vpack.c.b16 %v280, %v279
        %v304 = vpack.c.b16 %v282, %v281
        %v305 = vpack.c.b16 %v284, %v283
        %v306 = vpack.c.b16 %v286, %v285
        %v307 = vpack.c.b16 %v288, %v287
        %v308 = vpack.c.b16 %v290, %v289
        %v309 = vpack.c.b16 %v292, %v291
        %v310 = vpack.c.b16 %v294, %v293
        %v315 = vunpack.c.l.b16 %v220
        %v316 = vunpack.c.l.b16 %v221
        %v317 = vunpack.c.l.b16 %v222
        %v318 = vunpack.c.l.b16 %v223
        %v319 = vpack.c.b16 %v316, %v315
        %v320 = vpack.c.b16 %v318, %v317
        %vm323 = vcmask 261120
        %v325 = vsel %vm323, %v295, 0
        %v328 = vsel %vm323, %v296, 0
        %v331 = vsel %vm323, %v297, 0
        %v334 = vsel %vm323, %v298, 0
        %v337 = vsel %vm323, %v299, 0
        %v340 = vsel %vm323, %v300, 0
        %v343 = vsel %vm323, %v301, 0
        %v346 = vsel %vm323, %v302, 0
        %v349 = vsel %vm323, %v303, 0
        %v352 = vsel %vm323, %v304, 0
        %v355 = vsel %vm323, %v305, 0
        %v358 = vsel %vm323, %v306, 0
        %v361 = vsel %vm323, %v307, 0
        %v364 = vsel %vm323, %v308, 0
        %v367 = vsel %vm323, %v309, 0
        %v370 = vsel %vm323, %v310, 0
        %372 = vmatprep.subr.bf16.mxu0 0
        %373 = vmatpush1.bf16.msra.mxu0 %v319
        %374 = vmatprep.subr.bf16.mxu0 0
        %375 = vmatpush1.bf16.msra.mxu0 %v320
        %376 = vmatprep.subr.bf16.mxu0 0
        %377 = vmatpush1.bf16.msra.mxu0 0
        %378 = vmatprep.subr.bf16.mxu0 0
        %379 = vmatpush1.bf16.msra.mxu0 0
        %380 = vmatprep.subr.bf16.mxu0 0
        %381 = vmatpush1.bf16.msra.mxu0 0
        %382 = vmatprep.subr.bf16.mxu0 0
        %383 = vmatpush1.bf16.msra.mxu0 0
        %384 = vmatprep.subr.bf16.mxu0 0
        %385 = vmatpush1.bf16.msra.mxu0 0
        %386 = vmatprep.subr.bf16.mxu0 0
        %387 = vmatpush1.bf16.msra.mxu0 0
        %388 = vmatprep.subr.bf16.mxu0 0
        %389 = vmatpush1.bf16.msra.mxu0 0
        %390 = vmatprep.subr.bf16.mxu0 0
        %391 = vmatpush1.bf16.msra.mxu0 0
        %392 = vmatprep.subr.bf16.mxu0 0
        %393 = vmatpush1.bf16.msra.mxu0 0
        %394 = vmatprep.subr.bf16.mxu0 0
        %395 = vmatpush1.bf16.msra.mxu0 0
        %396 = vmatprep.subr.bf16.mxu0 0
        %397 = vmatpush1.bf16.msra.mxu0 0
        %398 = vmatprep.subr.bf16.mxu0 0
        %399 = vmatpush1.bf16.msra.mxu0 0
        %400 = vmatprep.subr.bf16.mxu0 0
        %401 = vmatpush1.bf16.msra.mxu0 0
        %402 = vmatprep.subr.bf16.mxu0 0
        %403 = vmatpush1.bf16.msra.mxu0 0
        %404 = vmatprep.mubr.bf16.mxu0 0
        %405 = vmatmul.mubr.bf16.gmra.mrb[0].mxu0 %v325
        %v406 = vpop.f32.mrb[0].mxu0
        %v407 = vadd.f32 %v229, %v406
        %v408 = vpop.f32.mrb[0].mxu0
        %v409 = vpop.f32.mrb[0].mxu0
        %v410 = vadd.f32 %v229, %v409
        %v411 = vpop.f32.mrb[0].mxu0
        %412 = vmatprep.mubr.bf16.mxu0 0
        %413 = vmatmul.mubr.bf16.gmra.mrb[0].mxu0 %v328
        %v414 = vpop.f32.mrb[0].mxu0
        %v415 = vadd.f32 %v229, %v414
        %v416 = vpop.f32.mrb[0].mxu0
        %v417 = vpop.f32.mrb[0].mxu0
        %v418 = vadd.f32 %v229, %v417
        %v419 = vpop.f32.mrb[0].mxu0
        %420 = vmatprep.mubr.bf16.mxu0 0
        %421 = vmatmul.mubr.bf16.gmra.mrb[0].mxu0 %v331
        %v422 = vpop.f32.mrb[0].mxu0
        %v423 = vadd.f32 %v229, %v422
        %v424 = vpop.f32.mrb[0].mxu0
        %v425 = vpop.f32.mrb[0].mxu0
        %v426 = vadd.f32 %v229, %v425
        %v427 = vpop.f32.mrb[0].mxu0
        %428 = vmatprep.mubr.bf16.mxu0 0
        %429 = vmatmul.mubr.bf16.gmra.mrb[0].mxu0 %v334
        %v430 = vpop.f32.mrb[0].mxu0
        %v431 = vadd.f32 %v229, %v430
        %v432 = vpop.f32.mrb[0].mxu0
        %v433 = vpop.f32.mrb[0].mxu0
        %v434 = vadd.f32 %v229, %v433
        %v435 = vpop.f32.mrb[0].mxu0
        %436 = vmatprep.mubr.bf16.mxu0 0
        %437 = vmatmul.mubr.bf16.gmra.mrb[0].mxu0 %v337
        %v438 = vpop.f32.mrb[0].mxu0
        %v439 = vadd.f32 %v229, %v438
        %v440 = vpop.f32.mrb[0].mxu0
        %v441 = vpop.f32.mrb[0].mxu0
        %v442 = vadd.f32 %v229, %v441
        %v443 = vpop.f32.mrb[0].mxu0
        %444 = vmatprep.mubr.bf16.mxu0 0
        %445 = vmatmul.mubr.bf16.gmra.mrb[0].mxu0 %v340
        %v446 = vpop.f32.mrb[0].mxu0
        %v447 = vadd.f32 %v229, %v446
        %v448 = vpop.f32.mrb[0].mxu0
        %v449 = vpop.f32.mrb[0].mxu0
        %v450 = vadd.f32 %v229, %v449
        %v451 = vpop.f32.mrb[0].mxu0
        %452 = vmatprep.mubr.bf16.mxu0 0
        %453 = vmatmul.mubr.bf16.gmra.mrb[0].mxu0 %v343
        %v454 = vpop.f32.mrb[0].mxu0
        %v455 = vadd.f32 %v229, %v454
        %v456 = vpop.f32.mrb[0].mxu0
        %v457 = vpop.f32.mrb[0].mxu0
        %v458 = vadd.f32 %v229, %v457
        %v459 = vpop.f32.mrb[0].mxu0
        %460 = vmatprep.mubr.bf16.mxu0 0
        %461 = vmatmul.mubr.bf16.gmra.mrb[0].mxu0 %v346
        %v462 = vpop.f32.mrb[0].mxu0
        %v463 = vadd.f32 %v229, %v462
        %v464 = vpop.f32.mrb[0].mxu0
        %v465 = vpop.f32.mrb[0].mxu0
        %v466 = vadd.f32 %v229, %v465
        %v467 = vpop.f32.mrb[0].mxu0
        %468 = vmatprep.mubr.bf16.mxu0 0
        %469 = vmatmul.mubr.bf16.gmra.mrb[0].mxu0 %v349
        %v470 = vpop.f32.mrb[0].mxu0
        %v471 = vadd.f32 %v229, %v470
        %v472 = vpop.f32.mrb[0].mxu0
        %v473 = vpop.f32.mrb[0].mxu0
        %v474 = vadd.f32 %v229, %v473
        %v475 = vpop.f32.mrb[0].mxu0
        %476 = vmatprep.mubr.bf16.mxu0 0
        %477 = vmatmul.mubr.bf16.gmra.mrb[0].mxu0 %v352
        %v478 = vpop.f32.mrb[0].mxu0
        %v479 = vadd.f32 %v229, %v478
        %v480 = vpop.f32.mrb[0].mxu0
        %v481 = vpop.f32.mrb[0].mxu0
        %v482 = vadd.f32 %v229, %v481
        %v483 = vpop.f32.mrb[0].mxu0
        %484 = vmatprep.mubr.bf16.mxu0 0
        %485 = vmatmul.mubr.bf16.gmra.mrb[0].mxu0 %v355
        %v486 = vpop.f32.mrb[0].mxu0
        %v487 = vadd.f32 %v229, %v486
        %v488 = vpop.f32.mrb[0].mxu0
        %v489 = vpop.f32.mrb[0].mxu0
        %v490 = vadd.f32 %v229, %v489
        %v491 = vpop.f32.mrb[0].mxu0
        %492 = vmatprep.mubr.bf16.mxu0 0
        %493 = vmatmul.mubr.bf16.gmra.mrb[0].mxu0 %v358
        %v494 = vpop.f32.mrb[0].mxu0
        %v495 = vadd.f32 %v229, %v494
        %v496 = vpop.f32.mrb[0].mxu0
        %v497 = vpop.f32.mrb[0].mxu0
        %v498 = vadd.f32 %v229, %v497
        %v499 = vpop.f32.mrb[0].mxu0
        %500 = vmatprep.mubr.bf16.mxu0 0
        %501 = vmatmul.mubr.bf16.gmra.mrb[0].mxu0 %v361
        %v502 = vpop.f32.mrb[0].mxu0
        %v503 = vadd.f32 %v229, %v502
        %v504 = vpop.f32.mrb[0].mxu0
        %v505 = vpop.f32.mrb[0].mxu0
        %v506 = vadd.f32 %v229, %v505
        %v507 = vpop.f32.mrb[0].mxu0
        %508 = vmatprep.mubr.bf16.mxu0 0
        %509 = vmatmul.mubr.bf16.gmra.mrb[0].mxu0 %v364
        %v510 = vpop.f32.mrb[0].mxu0
        %v511 = vadd.f32 %v229, %v510
        %v512 = vpop.f32.mrb[0].mxu0
        %v513 = vpop.f32.mrb[0].mxu0
        %v514 = vadd.f32 %v229, %v513
        %v515 = vpop.f32.mrb[0].mxu0
        %516 = vmatprep.mubr.bf16.mxu0 0
        %517 = vmatmul.mubr.bf16.gmra.mrb[0].mxu0 %v367
        %v518 = vpop.f32.mrb[0].mxu0
        %v519 = vadd.f32 %v229, %v518
        %v520 = vpop.f32.mrb[0].mxu0
        %v521 = vpop.f32.mrb[0].mxu0
        %v522 = vadd.f32 %v229, %v521
        %v523 = vpop.f32.mrb[0].mxu0
        %524 = vmatprep.mubr.bf16.mxu0 0
        %525 = vmatmul.mubr.bf16.gmra.mrb[0].mxu0 %v370
        %v526 = vpop.f32.mrb[0].mxu0
        %v527 = vadd.f32 %v229, %v526
        %v528 = vpop.f32.mrb[0].mxu0
        %v529 = vpop.f32.mrb[0].mxu0
        %v530 = vadd.f32 %v229, %v529
        %v531 = vpop.f32.mrb[0].mxu0
        %532 = vdwg.mxu0
        %v533 = vmax.f32 %v407, 0.0
        %v534 = vmax.f32 %v410, 0.0
        %v535 = vmax.f32 %v415, 0.0
        %v536 = vmax.f32 %v418, 0.0
        %v537 = vmax.f32 %v423, 0.0
        %v538 = vmax.f32 %v426, 0.0
        %v539 = vmax.f32 %v431, 0.0
        %v540 = vmax.f32 %v434, 0.0
        %v541 = vmax.f32 %v439, 0.0
        %v542 = vmax.f32 %v442, 0.0
        %v543 = vmax.f32 %v447, 0.0
        %v544 = vmax.f32 %v450, 0.0
        %v545 = vmax.f32 %v455, 0.0
        %v546 = vmax.f32 %v458, 0.0
        %v547 = vmax.f32 %v463, 0.0
        %v548 = vmax.f32 %v466, 0.0
        %v549 = vmax.f32 %v471, 0.0
        %v550 = vmax.f32 %v474, 0.0
        %v551 = vmax.f32 %v479, 0.0
        %v552 = vmax.f32 %v482, 0.0
        %v553 = vmax.f32 %v487, 0.0
        %v554 = vmax.f32 %v490, 0.0
        %v555 = vmax.f32 %v495, 0.0
        %v556 = vmax.f32 %v498, 0.0
        %v557 = vmax.f32 %v503, 0.0
        %v558 = vmax.f32 %v506, 0.0
        %v559 = vmax.f32 %v511, 0.0
        %v560 = vmax.f32 %v514, 0.0
        %v561 = vmax.f32 %v519, 0.0
        %v562 = vmax.f32 %v522, 0.0
        %v563 = vmax.f32 %v527, 0.0
        %v564 = vmax.f32 %v530, 0.0
        %v565 = vpack.c.bf16 %v534, %v533
        %v566 = vpack.c.bf16 %v536, %v535
        %v567 = vpack.c.bf16 %v538, %v537
        %v568 = vpack.c.bf16 %v540, %v539
        %v569 = vpack.c.bf16 %v542, %v541
        %v570 = vpack.c.bf16 %v544, %v543
        %v571 = vpack.c.bf16 %v546, %v545
        %v572 = vpack.c.bf16 %v548, %v547
        %v573 = vpack.c.bf16 %v550, %v549
        %v574 = vpack.c.bf16 %v552, %v551
        %v575 = vpack.c.bf16 %v554, %v553
        %v576 = vpack.c.bf16 %v556, %v555
        %v577 = vpack.c.bf16 %v558, %v557
        %v578 = vpack.c.bf16 %v560, %v559
        %v579 = vpack.c.bf16 %v562, %v561
        %v580 = vpack.c.bf16 %v564, %v563
        %v597 = vunpack.c.l.b16 %v565
        %v598 = vunpack.c.h.b16 %v565
        %v599 = vunpack.c.l.b16 %v566
        %v600 = vunpack.c.h.b16 %v566
        %v601 = vunpack.c.l.b16 %v567
        %v602 = vunpack.c.h.b16 %v567
        %v603 = vunpack.c.l.b16 %v568
        %v604 = vunpack.c.h.b16 %v568
        %v605 = vunpack.c.l.b16 %v569
        %v606 = vunpack.c.h.b16 %v569
        %v607 = vunpack.c.l.b16 %v570
        %v608 = vunpack.c.h.b16 %v570
        %v609 = vunpack.c.l.b16 %v571
        %v610 = vunpack.c.h.b16 %v571
        %v611 = vunpack.c.l.b16 %v572
        %v612 = vunpack.c.h.b16 %v572
        %v613 = vunpack.c.l.b16 %v573
        %v614 = vunpack.c.h.b16 %v573
        %v615 = vunpack.c.l.b16 %v574
        %v616 = vunpack.c.h.b16 %v574
        %v617 = vunpack.c.l.b16 %v575
        %v618 = vunpack.c.h.b16 %v575
        %v619 = vunpack.c.l.b16 %v576
        %v620 = vunpack.c.h.b16 %v576
        %v621 = vunpack.c.l.b16 %v577
        %v622 = vunpack.c.h.b16 %v577
        %v623 = vunpack.c.l.b16 %v578
        %v624 = vunpack.c.h.b16 %v578
        %v625 = vunpack.c.l.b16 %v579
        %v626 = vunpack.c.h.b16 %v579
        %v627 = vunpack.c.l.b16 %v580
        %v628 = vunpack.c.h.b16 %v580
        %v629 = vpack.c.b16 %v597, %v597
        %v630 = vpack.c.b16 %v598, %v598
        %v631 = vpack.c.b16 %v599, %v599
        %v632 = vpack.c.b16 %v600, %v600
        %v633 = vpack.c.b16 %v601, %v601
        %v634 = vpack.c.b16 %v602, %v602
        %v635 = vpack.c.b16 %v603, %v603
        %v636 = vpack.c.b16 %v604, %v604
        %v637 = vpack.c.b16 %v605, %v605
        %v638 = vpack.c.b16 %v606, %v606
        %v639 = vpack.c.b16 %v607, %v607
        %v640 = vpack.c.b16 %v608, %v608
        %v641 = vpack.c.b16 %v609, %v609
        %v642 = vpack.c.b16 %v610, %v610
        %v643 = vpack.c.b16 %v611, %v611
        %v644 = vpack.c.b16 %v612, %v612
        %v645 = vpack.c.b16 %v613, %v613
        %v646 = vpack.c.b16 %v614, %v614
        %v647 = vpack.c.b16 %v615, %v615
        %v648 = vpack.c.b16 %v616, %v616
        %v649 = vpack.c.b16 %v617, %v617
        %v650 = vpack.c.b16 %v618, %v618
        %v651 = vpack.c.b16 %v619, %v619
        %v652 = vpack.c.b16 %v620, %v620
        %v653 = vpack.c.b16 %v621, %v621
        %v654 = vpack.c.b16 %v622, %v622
        %v655 = vpack.c.b16 %v623, %v623
        %v656 = vpack.c.b16 %v624, %v624
        %v657 = vpack.c.b16 %v625, %v625
        %v658 = vpack.c.b16 %v626, %v626
        %v659 = vpack.c.b16 %v627, %v627
        %v660 = vpack.c.b16 %v628, %v628
        %vm693 = vcmask 125952
        %694 = vst.msk [vmem:[%s185] sm:$0xf] %vm693, %v629
        %695 = vst.msk [vmem:[%s185 + $0x4] sm:$0xf] %vm693, %v630
        %696 = vst.msk [vmem:[%s185 + $0x8] sm:$0xf] %vm693, %v631
        %697 = vst.msk [vmem:[%s185 + $0xc] sm:$0xf] %vm693, %v632
        %698 = vst.msk [vmem:[%s185 + $0x10] sm:$0xf] %vm693, %v633
        %699 = vst.msk [vmem:[%s185 + $0x14] sm:$0xf] %vm693, %v634
        %700 = vst.msk [vmem:[%s185 + $0x18] sm:$0xf] %vm693, %v635
        %701 = vst.msk [vmem:[%s185 + $0x1c] sm:$0xf] %vm693, %v636
        %702 = vst.msk [vmem:[%s185 + $0x20] sm:$0xf] %vm693, %v637
        %703 = vst.msk [vmem:[%s185 + $0x24] sm:$0xf] %vm693, %v638
        %704 = vst.msk [vmem:[%s185 + $0x28] sm:$0xf] %vm693, %v639
        %705 = vst.msk [vmem:[%s185 + $0x2c] sm:$0xf] %vm693, %v640
        %706 = vst.msk [vmem:[%s185 + $0x30] sm:$0xf] %vm693, %v641
        %707 = vst.msk [vmem:[%s185 + $0x34] sm:$0xf] %vm693, %v642
        %708 = vst.msk [vmem:[%s185 + $0x38] sm:$0xf] %vm693, %v643
        %709 = vst.msk [vmem:[%s185 + $0x3c] sm:$0xf] %vm693, %v644
        %710 = vst.msk [vmem:[%s185 + $0x40] sm:$0xf] %vm693, %v645
        %711 = vst.msk [vmem:[%s185 + $0x44] sm:$0xf] %vm693, %v646
        %712 = vst.msk [vmem:[%s185 + $0x48] sm:$0xf] %vm693, %v647
        %713 = vst.msk [vmem:[%s185 + $0x4c] sm:$0xf] %vm693, %v648
        %714 = vst.msk [vmem:[%s185 + $0x50] sm:$0xf] %vm693, %v649
        %715 = vst.msk [vmem:[%s185 + $0x54] sm:$0xf] %vm693, %v650
        %716 = vst.msk [vmem:[%s185 + $0x58] sm:$0xf] %vm693, %v651
        %717 = vst.msk [vmem:[%s185 + $0x5c] sm:$0xf] %vm693, %v652
        %718 = vst.msk [vmem:[%s185 + $0x60] sm:$0xf] %vm693, %v653
        %719 = vst.msk [vmem:[%s185 + $0x64] sm:$0xf] %vm693, %v654
        %720 = vst.msk [vmem:[%s185 + $0x68] sm:$0xf] %vm693, %v655
        %721 = vst.msk [vmem:[%s185 + $0x6c] sm:$0xf] %vm693, %v656
        %722 = vst.msk [vmem:[%s185 + $0x70] sm:$0xf] %vm693, %v657
        %723 = vst.msk [vmem:[%s185 + $0x74] sm:$0xf] %vm693, %v658
        %724 = vst.msk [vmem:[%s185 + $0x78] sm:$0xf] %vm693, %v659
        %725 = vst.msk [vmem:[%s185 + $0x7c] sm:$0xf] %vm693, %v660
        %s726 = smul.u32 32, %s15
        %p727 = scmp.lt.s32.totalorder %s726, 63
        %s728 = scalar_select %p727, %s726, 63
        %s729 = smul.addr %s728, 4
        %s730 = scalar_lea.vmem %s3, %s729
        // Predicated region
        $region37: #{octree_res_block_forward.2} parent=31 // pred_check
          %p731 = pneg %p101
        $region38: #{octree_res_block_forward.2} parent=31 // pred_check_branch
          %733 = sbr.rel (%p731) target = $region40
        $region39: #{octree_res_block_forward.2} parent=31 // pred_region
          %s734 = smul.u32 32, %s15
        $region40: #{octree_res_block_forward.2} parent=31 // pred_fallthru
          _
      $region32: #{octree_res_block_forward.2} parent=5 // pred_fallthru
        _
      %p735 = scmp.le.s32.totalorder 2, %s10
      // Predicated region
      $region41: #{octree_res_block_forward.2} parent=5 // pred_check
        %p736 = pneg %p735
      $region42: #{octree_res_block_forward.2} parent=5 // pred_check_branch
        %738 = sbr.rel (%p736) target = $region44
      $region43: #{octree_res_block_forward.2} parent=5 // pred_region
        %s739 = ssub.s32 %s10, 2
        // Predicated region
        $region45: #{octree_res_block_forward.2} parent=43 // pred_check
          %p740 = pneg %p107
        $region46: #{octree_res_block_forward.2} parent=43 // pred_check_branch
          %742 = sbr.rel (%p740) target = $region48
        $region47: #{octree_res_block_forward.2} parent=43 // pred_region
          %s743 = smul.u32 32, %s16
          %p744 = scmp.lt.s32.totalorder %s743, 63
          %s745 = scalar_select %p744, %s743, 63
          %s746 = smul.addr %s745, 4
          %s747 = scalar_lea.vmem %s3, %s746
        $region48: #{octree_res_block_forward.2} parent=43 // pred_fallthru
          _
      $region44: #{octree_res_block_forward.2} parent=5 // pred_fallthru
        _
    $region6: #{octree_res_block_forward.2} parent=1 // loop_footer
      %s14 = sadd.s32 1, %s10
    $region7: #{octree_res_block_forward.2} parent=1 // loop_footer_branch
      %9 = sbr.rel target = $region3
    $region8: #{octree_res_block_forward.2} parent=1 // loop_exit
      _
    %748 = vsyncpa [#allocation3], 1
    %s749 = scalar_lea.sflag [#allocation3], 1
    %750 = vsyncpa %s749, 1

// kernel: octree_res_block_forward.3
$region0: #{octree_res_block_forward.3}
  #allocation0 [shape = 'u32[]', space=smem, size = 0x4, offset = 0x4, fixed_abs, tag = 'smem constant byte address 0x4 - core index']
  #allocation1 [shape = 'u32[144,128]{1,0:T(1,128)}', space=vmem, size = 0x12000, scoped, tag = 'internal scratch']
  %s0 = inlined_call_operand.vmem [shape: bf16[512,432], index: 0, kind: input, shape index: {}]
  %s1 = inlined_call_operand.vmem [shape: bf16[512,32], index: 1, kind: input, shape index: {}]
  %s2 = inlined_call_operand.vmem [shape: bf16[432,16], index: 2, kind: input, shape index: {}]
  %s3 = inlined_call_operand.vmem [shape: f32[1,16], index: 3, kind: input, shape index: {}]
  %s4 = inlined_call_operand.vmem [shape: bf16[16,128], index: 4, kind: input, shape index: {}]
  %s5 = inlined_call_operand.vmem [shape: f32[1,128], index: 5, kind: input, shape index: {}]
  %s6 = inlined_call_operand.vmem [shape: bf16[32,128], index: 6, kind: input, shape index: {}]
  %s7 = inlined_call_operand.vmem [shape: f32[1,128], index: 7, kind: input, shape index: {}]
  %s8 = inlined_call_operand.vmem [shape: bf16[512,128], index: 8, kind: output, shape index: {}]
  %s9 = sld [smem:[#allocation0]]
  $region65: #{octree_res_block_forward.3} parent=0
    _
  %s11 = ssub.s32 1, %s9
  %s12 = scalar_select 0, %s11, %s9
  loop: start=0, step=1, limit=4
  $region2: #{octree_res_block_forward.3} parent=0 // loop_pre_header
    _
  $region3: #{octree_res_block_forward.3} parent=0 // loop_header
    %s14 = sphi 0, %s18
    %p15 = scmp.ge.s32.totalorder %s14, 4
    %s24 = sphi 0, %s26
    %s27 = sphi 0, %s24
    %s28 = sphi 0, %s27
    %s44 = sphi 0, %s28
    %s50 = sphi 0, %s52
    %s53 = sphi 0, %s50
    %s54 = sphi 0, %s53
    %s70 = sphi 0, %s54
    %s74 = sphi 0, %s74
    %s76 = sphi 0, %s74
    %s77 = sphi 0, %s76
    %s91 = sphi 0, %s77
    %s95 = sphi 0, %s95
    %s97 = sphi 0, %s95
    %s98 = sphi 0, %s97
    %s112 = sphi 0, %s98
    %s116 = sphi 0, %s116
    %s118 = sphi 0, %s116
    %s119 = sphi 0, %s118
    %s133 = sphi 0, %s119
    %s137 = sphi 0, %s137
    %s139 = sphi 0, %s137
    %s140 = sphi 0, %s139
    %s154 = sphi 0, %s140
    %s158 = sphi 0, %s158
    %s160 = sphi 0, %s158
    %s161 = sphi 0, %s160
    %s175 = sphi 0, %s161
    %s179 = sphi 0, %s179
    %s181 = sphi 0, %s179
    %s182 = sphi 0, %s181
    %s196 = sphi 0, %s182
    %s202 = sphi 0, %s204
    %s205 = sphi 0, %s202
    %s206 = sphi 0, %s205
    %s222 = sphi 0, %s206
  $region4: #{octree_res_block_forward.3} parent=0 // loop_header_branch
    %17 = sbr.rel (%p15) target = $region8
  $region5: #{octree_res_block_forward.3} parent=0 // loop_body
    %s19 = ssub.s32 %s14, 1
    %s20 = ssub.s32 %s14, 2
    %s21 = sadd.s32 %s14, 1
    %s22 = ssub.s32 %s14, %s21
    %p23 = scmp.eq.s32.totalorder %s22, 0
    %s25 = sadd.s32 %s24, 1
    %s26 = scalar_select %p23, %s24, %s25
    %p29 = pneg %p23
    %p30 = scmp.eq.s32.totalorder %s14, 1
    %p31 = por %p29, %p30
    %p32 = scmp.ne.s32.totalorder %s24, %s27
    %p33 = scmp.eq.s32.totalorder %s14, 0
    %p34 = por %p32, %p33
    %p35 = scmp.ne.s32.totalorder %s24, %s27
    %p36 = scmp.eq.s32.totalorder %s19, 1
    %p37 = por %p35, %p36
    %p38 = scmp.ne.s32.totalorder %s27, %s28
    %p39 = scmp.eq.s32.totalorder %s19, 0
    %p40 = por %p38, %p39
    %p41 = scmp.ne.s32.totalorder %s27, %s28
    %p42 = scmp.eq.s32.totalorder %s20, 1
    %p43 = por %p41, %p42
    %p45 = scmp.ne.s32.totalorder %s28, %s44
    %p46 = scmp.eq.s32.totalorder %s20, 0
    %p47 = por %p45, %p46
    %s48 = ssub.s32 %s14, %s21
    %p49 = scmp.eq.s32.totalorder %s48, 0
    %s51 = sadd.s32 %s50, 1
    %s52 = scalar_select %p49, %s50, %s51
    %p55 = pneg %p49
    %p56 = scmp.eq.s32.totalorder %s14, 1
    %p57 = por %p55, %p56
    %p58 = scmp.ne.s32.totalorder %s50, %s53
    %p59 = scmp.eq.s32.totalorder %s14, 0
    %p60 = por %p58, %p59
    %p61 = scmp.ne.s32.totalorder %s50, %s53
    %p62 = scmp.eq.s32.totalorder %s19, 1
    %p63 = por %p61, %p62
    %p64 = scmp.ne.s32.totalorder %s53, %s54
    %p65 = scmp.eq.s32.totalorder %s19, 0
    %p66 = por %p64, %p65
    %p67 = scmp.ne.s32.totalorder %s53, %s54
    %p68 = scmp.eq.s32.totalorder %s20, 1
    %p69 = por %p67, %p68
    %p71 = scmp.ne.s32.totalorder %s54, %s70
    %p72 = scmp.eq.s32.totalorder %s20, 0
    %p73 = por %p71, %p72
    %s75 = sadd.s32 %s74, 1
    %p78 = scmp.eq.s32.totalorder %s14, 1
    %p79 = scmp.ne.s32.totalorder %s74, %s76
    %p80 = scmp.eq.s32.totalorder %s14, 0
    %p81 = por %p79, %p80
    %p82 = scmp.ne.s32.totalorder %s74, %s76
    %p83 = scmp.eq.s32.totalorder %s19, 1
    %p84 = por %p82, %p83
    %p85 = scmp.ne.s32.totalorder %s76, %s77
    %p86 = scmp.eq.s32.totalorder %s19, 0
    %p87 = por %p85, %p86
    %p88 = scmp.ne.s32.totalorder %s76, %s77
    %p89 = scmp.eq.s32.totalorder %s20, 1
    %p90 = por %p88, %p89
    %p92 = scmp.ne.s32.totalorder %s77, %s91
    %p93 = scmp.eq.s32.totalorder %s20, 0
    %p94 = por %p92, %p93
    %s96 = sadd.s32 %s95, 1
    %p99 = scmp.eq.s32.totalorder %s14, 1
    %p100 = scmp.ne.s32.totalorder %s95, %s97
    %p101 = scmp.eq.s32.totalorder %s14, 0
    %p102 = por %p100, %p101
    %p103 = scmp.ne.s32.totalorder %s95, %s97
    %p104 = scmp.eq.s32.totalorder %s19, 1
    %p105 = por %p103, %p104
    %p106 = scmp.ne.s32.totalorder %s97, %s98
    %p107 = scmp.eq.s32.totalorder %s19, 0
    %p108 = por %p106, %p107
    %p109 = scmp.ne.s32.totalorder %s97, %s98
    %p110 = scmp.eq.s32.totalorder %s20, 1
    %p111 = por %p109, %p110
    %p113 = scmp.ne.s32.totalorder %s98, %s112
    %p114 = scmp.eq.s32.totalorder %s20, 0
    %p115 = por %p113, %p114
    %s117 = sadd.s32 %s116, 1
    %p120 = scmp.eq.s32.totalorder %s14, 1
    %p121 = scmp.ne.s32.totalorder %s116, %s118
    %p122 = scmp.eq.s32.totalorder %s14, 0
    %p123 = por %p121, %p122
    %p124 = scmp.ne.s32.totalorder %s116, %s118
    %p125 = scmp.eq.s32.totalorder %s19, 1
    %p126 = por %p124, %p125
    %p127 = scmp.ne.s32.totalorder %s118, %s119
    %p128 = scmp.eq.s32.totalorder %s19, 0
    %p129 = por %p127, %p128
    %p130 = scmp.ne.s32.totalorder %s118, %s119
    %p131 = scmp.eq.s32.totalorder %s20, 1
    %p132 = por %p130, %p131
    %p134 = scmp.ne.s32.totalorder %s119, %s133
    %p135 = scmp.eq.s32.totalorder %s20, 0
    %p136 = por %p134, %p135
    %s138 = sadd.s32 %s137, 1
    %p141 = scmp.eq.s32.totalorder %s14, 1
    %p142 = scmp.ne.s32.totalorder %s137, %s139
    %p143 = scmp.eq.s32.totalorder %s14, 0
    %p144 = por %p142, %p143
    %p145 = scmp.ne.s32.totalorder %s137, %s139
    %p146 = scmp.eq.s32.totalorder %s19, 1
    %p147 = por %p145, %p146
    %p148 = scmp.ne.s32.totalorder %s139, %s140
    %p149 = scmp.eq.s32.totalorder %s19, 0
    %p150 = por %p148, %p149
    %p151 = scmp.ne.s32.totalorder %s139, %s140
    %p152 = scmp.eq.s32.totalorder %s20, 1
    %p153 = por %p151, %p152
    %p155 = scmp.ne.s32.totalorder %s140, %s154
    %p156 = scmp.eq.s32.totalorder %s20, 0
    %p157 = por %p155, %p156
    %s159 = sadd.s32 %s158, 1
    %p162 = scmp.eq.s32.totalorder %s14, 1
    %p163 = scmp.ne.s32.totalorder %s158, %s160
    %p164 = scmp.eq.s32.totalorder %s14, 0
    %p165 = por %p163, %p164
    %p166 = scmp.ne.s32.totalorder %s158, %s160
    %p167 = scmp.eq.s32.totalorder %s19, 1
    %p168 = por %p166, %p167
    %p169 = scmp.ne.s32.totalorder %s160, %s161
    %p170 = scmp.eq.s32.totalorder %s19, 0
    %p171 = por %p169, %p170
    %p172 = scmp.ne.s32.totalorder %s160, %s161
    %p173 = scmp.eq.s32.totalorder %s20, 1
    %p174 = por %p172, %p173
    %p176 = scmp.ne.s32.totalorder %s161, %s175
    %p177 = scmp.eq.s32.totalorder %s20, 0
    %p178 = por %p176, %p177
    %s180 = sadd.s32 %s179, 1
    %p183 = scmp.eq.s32.totalorder %s14, 1
    %p184 = scmp.ne.s32.totalorder %s179, %s181
    %p185 = scmp.eq.s32.totalorder %s14, 0
    %p186 = por %p184, %p185
    %p187 = scmp.ne.s32.totalorder %s179, %s181
    %p188 = scmp.eq.s32.totalorder %s19, 1
    %p189 = por %p187, %p188
    %p190 = scmp.ne.s32.totalorder %s181, %s182
    %p191 = scmp.eq.s32.totalorder %s19, 0
    %p192 = por %p190, %p191
    %p193 = scmp.ne.s32.totalorder %s181, %s182
    %p194 = scmp.eq.s32.totalorder %s20, 1
    %p195 = por %p193, %p194
    %p197 = scmp.ne.s32.totalorder %s182, %s196
    %p198 = scmp.eq.s32.totalorder %s20, 0
    %p199 = por %p197, %p198
    %s200 = ssub.s32 %s14, %s21
    %p201 = scmp.eq.s32.totalorder %s200, 0
    %s203 = sadd.s32 %s202, 1
    %s204 = scalar_select %p201, %s202, %s203
    %p207 = pneg %p201
    %p208 = scmp.eq.s32.totalorder %s14, 1
    %p209 = por %p207, %p208
    %p210 = scmp.ne.s32.totalorder %s202, %s205
    %p211 = scmp.eq.s32.totalorder %s14, 0
    %p212 = por %p210, %p211
    %p213 = scmp.ne.s32.totalorder %s202, %s205
    %p214 = scmp.eq.s32.totalorder %s19, 1
    %p215 = por %p213, %p214
    %p216 = scmp.ne.s32.totalorder %s205, %s206
    %p217 = scmp.eq.s32.totalorder %s19, 0
    %p218 = por %p216, %p217
    %p219 = scmp.ne.s32.totalorder %s205, %s206
    %p220 = scmp.eq.s32.totalorder %s20, 1
    %p221 = por %p219, %p220
    %p223 = scmp.ne.s32.totalorder %s206, %s222
    %p224 = scmp.eq.s32.totalorder %s20, 0
    %p225 = por %p223, %p224
    %p226 = scmp.le.s32.totalorder 1, %s14
    %p227 = scmp.lt.s32.totalorder %s14, 3
    %p228 = pnand %p226, %p227
    %p229 = pneg %p228
    // Predicated region
    $region9: #{octree_res_block_forward.3} parent=5 // pred_check
      _
    $region10: #{octree_res_block_forward.3} parent=5 // pred_check_branch
      %231 = sbr.rel (%p228) target = $region12
    $region11: #{octree_res_block_forward.3} parent=5 // pred_region
      %s232 = ssub.s32 %s14, 1
      // Predicated region
      $region13: #{octree_res_block_forward.3} parent=11 // pred_check
        %p233 = pneg %p87
      $region14: #{octree_res_block_forward.3} parent=11 // pred_check_branch
        %235 = sbr.rel (%p233) target = $region16
      $region15: #{octree_res_block_forward.3} parent=11 // pred_region
        _
      $region16: #{octree_res_block_forward.3} parent=11 // pred_fallthru
        _
      // Predicated region
      $region17: #{octree_res_block_forward.3} parent=11 // pred_check
        %p236 = pneg %p108
      $region18: #{octree_res_block_forward.3} parent=11 // pred_check_branch
        %238 = sbr.rel (%p236) target = $region20
      $region19: #{octree_res_block_forward.3} parent=11 // pred_region
        _
      $region20: #{octree_res_block_forward.3} parent=11 // pred_fallthru
        _
      // Predicated region
      $region21: #{octree_res_block_forward.3} parent=11 // pred_check
        %p239 = pneg %p129
      $region22: #{octree_res_block_forward.3} parent=11 // pred_check_branch
        %241 = sbr.rel (%p239) target = $region24
      $region23: #{octree_res_block_forward.3} parent=11 // pred_region
        _
      $region24: #{octree_res_block_forward.3} parent=11 // pred_fallthru
        _
      // Predicated region
      $region25: #{octree_res_block_forward.3} parent=11 // pred_check
        %p242 = pneg %p150
      $region26: #{octree_res_block_forward.3} parent=11 // pred_check_branch
        %244 = sbr.rel (%p242) target = $region28
      $region27: #{octree_res_block_forward.3} parent=11 // pred_region
        _
      $region28: #{octree_res_block_forward.3} parent=11 // pred_fallthru
        _
      // Predicated region
      $region29: #{octree_res_block_forward.3} parent=11 // pred_check
        %p245 = pneg %p171
      $region30: #{octree_res_block_forward.3} parent=11 // pred_check_branch
        %247 = sbr.rel (%p245) target = $region32
      $region31: #{octree_res_block_forward.3} parent=11 // pred_region
        _
      $region32: #{octree_res_block_forward.3} parent=11 // pred_fallthru
        _
      // Predicated region
      $region33: #{octree_res_block_forward.3} parent=11 // pred_check
        %p248 = pneg %p192
      $region34: #{octree_res_block_forward.3} parent=11 // pred_check_branch
        %250 = sbr.rel (%p248) target = $region36
      $region35: #{octree_res_block_forward.3} parent=11 // pred_region
        _
      $region36: #{octree_res_block_forward.3} parent=11 // pred_fallthru
        _
    $region12: #{octree_res_block_forward.3} parent=5 // pred_fallthru
      _
    %p251 = scmp.lt.s32.totalorder %s14, 2
    // Predicated region
    $region37: #{octree_res_block_forward.3} parent=5 // pred_check
      %p252 = pneg %p251
    $region38: #{octree_res_block_forward.3} parent=5 // pred_check_branch
      %254 = sbr.rel (%p252) target = $region40
    $region39: #{octree_res_block_forward.3} parent=5 // pred_region
      // Predicated region
      $region41: #{octree_res_block_forward.3} parent=39 // pred_check
        %p255 = pneg %p34
      $region42: #{octree_res_block_forward.3} parent=39 // pred_check_branch
        %257 = sbr.rel (%p255) target = $region44
      $region43: #{octree_res_block_forward.3} parent=39 // pred_region
        %s258 = smul.u32 32, %s14
        %p259 = scmp.lt.s32.totalorder %s258, 63
        %s260 = scalar_select %p259, %s258, 63
        %s261 = smul.addr %s260, 4
        %s262 = smul.addr %s261, 4
        %s263 = scalar_lea.vmem %s0, %s262
        %s264 = smul.u32 32, %s14
      $region44: #{octree_res_block_forward.3} parent=39 // pred_fallthru
        _
      // Predicated region
      $region45: #{octree_res_block_forward.3} parent=39 // pred_check
        %p265 = pneg %p60
      $region46: #{octree_res_block_forward.3} parent=39 // pred_check_branch
        %267 = sbr.rel (%p265) target = $region48
      $region47: #{octree_res_block_forward.3} parent=39 // pred_region
        %s268 = smul.u32 32, %s14
        %p269 = scmp.lt.s32.totalorder %s268, 63
        %s270 = scalar_select %p269, %s268, 63
        %s271 = smul.addr %s270, 4
        %s272 = scalar_lea.vmem %s1, %s271
        %s273 = smul.u32 32, %s14
      $region48: #{octree_res_block_forward.3} parent=39 // pred_fallthru
        _
    $region40: #{octree_res_block_forward.3} parent=5 // pred_fallthru
      _
    %p274 = scmp.le.s32.totalorder 1, %s14
    %p275 = scmp.lt.s32.totalorder %s14, 3
    %p276 = pnand %p274, %p275
    %p277 = pneg %p276
    // Predicated region
    $region49: #{octree_res_block_forward.3} parent=5 // pred_check
      _
    $region50: #{octree_res_block_forward.3} parent=5 // pred_check_branch
      %279 = sbr.rel (%p276) target = $region52
    $region51: #{octree_res_block_forward.3} parent=5 // pred_region
      %s280 = ssub.s32 %s14, 1
      %s281 = smul.u32 32, %s19
      %p282 = scmp.lt.s32.totalorder %s281, 63
      %s283 = scalar_select %p282, %s281, 63
      %s284 = smul.addr %s283, 4
      %s285 = smul.addr %s284, 4
      %s286 = scalar_lea.vmem %s0, %s285
      %p287 = pneg %p40
      %p288 = pneg %p37
      %s289 = smul.u32 32, %s19
      %p290 = scmp.lt.s32.totalorder %s289, 63
      %s291 = scalar_select %p290, %s289, 63
      %s292 = smul.addr %s291, 4
      %s293 = scalar_lea.vmem %s1, %s292
      %p294 = pneg %p66
      %p295 = pneg %p63
      %p296 = pneg %p87
      %p297 = pneg %p84
      %p298 = pneg %p108
      %p299 = pneg %p105
      %p300 = pneg %p129
      %p301 = pneg %p126
      %p302 = pneg %p150
      %p303 = pneg %p147
      %p304 = pneg %p171
      %p305 = pneg %p168
      %p306 = pneg %p192
      %p307 = pneg %p189
      %p308 = pneg %p218
      %p309 = pneg %p215
      %s310 = smul.u32 32, %s19
      %p311 = scmp.lt.s32.totalorder %s310, 63
      %s312 = scalar_select %p311, %s310, 63
      %s313 = smul.addr %s312, 4
      %s314 = scalar_lea.vmem %s8, %s313
      %s315 = smul.u32 32, %s19
      %p316 = scmp.lt.s32.totalorder %s315, 63
      %s317 = scalar_select %p316, %s315, 63
      %s318 = smul.addr %s317, 4
      %s319 = smul.addr %s318, 4
      %s320 = scalar_lea.vmem %s0, %s319
      %s321 = smul.u32 32, %s19
      %s322 = smul.u32 32, %s19
      %p323 = scmp.lt.s32.totalorder %s322, 63
      %s324 = scalar_select %p323, %s322, 63
      %s325 = smul.addr %s324, 4
      %s326 = scalar_lea.vmem %s1, %s325
      %s327 = smul.u32 32, %s19
      %s328 = smul.u32 32, %s19
      %p329 = scmp.lt.s32.totalorder %s328, 63
      %s330 = scalar_select %p329, %s328, 63
      %s331 = smul.addr %s330, 4
      %s332 = scalar_lea.vmem %s8, %s331
      %s333 = smul.u32 32, %s19
      %v335 = vld [vmem:[%s320] sm:$0xff]
      %v336 = vld [vmem:[%s320 + $0x8] sm:$0xff]
      %v337 = vld [vmem:[%s320 + $0x10] sm:$0xff]
      %v338 = vld [vmem:[%s320 + $0x18] sm:$0xff]
      %v339 = vld [vmem:[%s320 + $0x20] sm:$0xff]
      %v340 = vld [vmem:[%s320 + $0x28] sm:$0xff]
      %v341 = vld [vmem:[%s320 + $0x30] sm:$0xff]
      %v342 = vld [vmem:[%s320 + $0x38] sm:$0xff]
      %v343 = vld [vmem:[%s320 + $0x40] sm:$0xff]
      %v344 = vld [vmem:[%s320 + $0x48] sm:$0xff]
      %v345 = vld [vmem:[%s320 + $0x50] sm:$0xff]
      %v346 = vld [vmem:[%s320 + $0x58] sm:$0xff]
      %v347 = vld [vmem:[%s320 + $0x60] sm:$0xff]
      %v348 = vld [vmem:[%s320 + $0x68] sm:$0xff]
      %v349 = vld [vmem:[%s320 + $0x70] sm:$0xff]
      %v350 = vld [vmem:[%s320 + $0x78] sm:$0xff]
      %v351 = vld [vmem:[%s320 + $0x80] sm:$0xff]
      %v352 = vld [vmem:[%s320 + $0x88] sm:$0xff]
      %v353 = vld [vmem:[%s320 + $0x90] sm:$0xff]
      %v354 = vld [vmem:[%s320 + $0x98] sm:$0xff]
      %v355 = vld [vmem:[%s320 + $0xa0] sm:$0xff]
      %v356 = vld [vmem:[%s320 + $0xa8] sm:$0xff]
      %v357 = vld [vmem:[%s320 + $0xb0] sm:$0xff]
      %v358 = vld [vmem:[%s320 + $0xb8] sm:$0xff]
      %v359 = vld [vmem:[%s320 + $0xc0] sm:$0xff]
      %v360 = vld [vmem:[%s320 + $0xc8] sm:$0xff]
      %v361 = vld [vmem:[%s320 + $0xd0] sm:$0xff]
      %v362 = vld [vmem:[%s320 + $0xd8] sm:$0xff]
      %v363 = vld [vmem:[%s320 + $0xe0] sm:$0xff]
      %v364 = vld [vmem:[%s320 + $0xe8] sm:$0xff]
      %v365 = vld [vmem:[%s320 + $0xf0] sm:$0xff]
      %v366 = vld [vmem:[%s320 + $0xf8] sm:$0xff]
      %v367 = vld [vmem:[%s320 + $0x100] sm:$0xff]
      %v368 = vld [vmem:[%s320 + $0x108] sm:$0xff]
      %v369 = vld [vmem:[%s320 + $0x110] sm:$0xff]
      %v370 = vld [vmem:[%s320 + $0x118] sm:$0xff]
      %v371 = vld [vmem:[%s320 + $0x120] sm:$0xff]
      %v372 = vld [vmem:[%s320 + $0x128] sm:$0xff]
      %v373 = vld [vmem:[%s320 + $0x130] sm:$0xff]
      %v374 = vld [vmem:[%s320 + $0x138] sm:$0xff]
      %v375 = vld [vmem:[%s320 + $0x140] sm:$0xff]
      %v376 = vld [vmem:[%s320 + $0x148] sm:$0xff]
      %v377 = vld [vmem:[%s320 + $0x150] sm:$0xff]
      %v378 = vld [vmem:[%s320 + $0x158] sm:$0xff]
      %v379 = vld [vmem:[%s320 + $0x160] sm:$0xff]
      %v380 = vld [vmem:[%s320 + $0x168] sm:$0xff]
      %v381 = vld [vmem:[%s320 + $0x170] sm:$0xff]
      %v382 = vld [vmem:[%s320 + $0x178] sm:$0xff]
      %v383 = vld [vmem:[%s320 + $0x180] sm:$0xff]
      %v384 = vld [vmem:[%s320 + $0x188] sm:$0xff]
      %v385 = vld [vmem:[%s320 + $0x190] sm:$0xff]
      %v386 = vld [vmem:[%s320 + $0x198] sm:$0xff]
      %v387 = vld [vmem:[%s320 + $0x1a0] sm:$0xff]
      %v388 = vld [vmem:[%s320 + $0x1a8] sm:$0xff]
      %v389 = vld [vmem:[%s320 + $0x1b0] sm:$0xff]
      %v390 = vld [vmem:[%s320 + $0x1b8] sm:$0xff]
      %v391 = vld [vmem:[%s320 + $0x1c0] sm:$0xff]
      %v392 = vld [vmem:[%s320 + $0x1c8] sm:$0xff]
      %v393 = vld [vmem:[%s320 + $0x1d0] sm:$0xff]
      %v394 = vld [vmem:[%s320 + $0x1d8] sm:$0xff]
      %v395 = vld [vmem:[%s320 + $0x1e0] sm:$0xff]
      %v396 = vld [vmem:[%s320 + $0x1e8] sm:$0xff]
      %v397 = vld [vmem:[%s320 + $0x1f0] sm:$0xff]
      %v398 = vld [vmem:[%s320 + $0x1f8] sm:$0xff]
      %v399 = vld [vmem:[%s2] sm:$0xf]
      %v400 = vld [vmem:[%s2 + $0x4] sm:$0xf]
      %v401 = vld [vmem:[%s2 + $0x8] sm:$0xf]
      %v402 = vld [vmem:[%s2 + $0xc] sm:$0xf]
      %v403 = vld [vmem:[%s2 + $0x10] sm:$0xf]
      %v404 = vld [vmem:[%s2 + $0x14] sm:$0xf]
      %v405 = vld [vmem:[%s2 + $0x18] sm:$0xf]
      %v406 = vld [vmem:[%s2 + $0x1c] sm:$0xf]
      %v407 = vld [vmem:[%s2 + $0x20] sm:$0xf]
      %v408 = vld [vmem:[%s2 + $0x24] sm:$0xf]
      %v409 = vld [vmem:[%s2 + $0x28] sm:$0xf]
      %v410 = vld [vmem:[%s2 + $0x2c] sm:$0xf]
      %v411 = vld [vmem:[%s2 + $0x30] sm:$0xf]
      %v412 = vld [vmem:[%s2 + $0x34] sm:$0xf]
      %v413 = vld [vmem:[%s2 + $0x38] sm:$0xf]
      %v414 = vld [vmem:[%s2 + $0x3c] sm:$0xf]
      %v415 = vld [vmem:[%s2 + $0x40] sm:$0xf]
      %v416 = vld [vmem:[%s2 + $0x44] sm:$0xf]
      %v417 = vld [vmem:[%s2 + $0x48] sm:$0xf]
      %v418 = vld [vmem:[%s2 + $0x4c] sm:$0xf]
      %v419 = vld [vmem:[%s2 + $0x50] sm:$0xf]
      %v420 = vld [vmem:[%s2 + $0x54] sm:$0xf]
      %v421 = vld [vmem:[%s2 + $0x58] sm:$0xf]
      %v422 = vld [vmem:[%s2 + $0x5c] sm:$0xf]
      %v423 = vld [vmem:[%s2 + $0x60] sm:$0xf]
      %v424 = vld [vmem:[%s2 + $0x64] sm:$0xf]
      %v425 = vld [vmem:[%s2 + $0x68] sm:$0xf]
      %v426 = vld [vmem:[%s2 + $0x6c] sm:$0xf]
      %v427 = vld [vmem:[%s2 + $0x70] sm:$0xf]
      %v428 = vld [vmem:[%s2 + $0x74] sm:$0xf]
      %v429 = vld [vmem:[%s2 + $0x78] sm:$0xf]
      %v430 = vld [vmem:[%s2 + $0x7c] sm:$0xf]
      %v431 = vld [vmem:[%s2 + $0x80] sm:$0xf]
      %v432 = vld [vmem:[%s2 + $0x84] sm:$0xf]
      %v433 = vld [vmem:[%s2 + $0x88] sm:$0xf]
      %v434 = vld [vmem:[%s2 + $0x8c] sm:$0xf]
      %v435 = vld [vmem:[%s2 + $0x90] sm:$0xf]
      %v436 = vld [vmem:[%s2 + $0x94] sm:$0xf]
      %v437 = vld [vmem:[%s2 + $0x98] sm:$0xf]
      %v438 = vld [vmem:[%s2 + $0x9c] sm:$0xf]
      %v439 = vld [vmem:[%s2 + $0xa0] sm:$0xf]
      %v440 = vld [vmem:[%s2 + $0xa4] sm:$0xf]
      %v441 = vld [vmem:[%s2 + $0xa8] sm:$0xf]
      %v442 = vld [vmem:[%s2 + $0xac] sm:$0xf]
      %v443 = vld [vmem:[%s2 + $0xb0] sm:$0xf]
      %v444 = vld [vmem:[%s2 + $0xb4] sm:$0xf]
      %v445 = vld [vmem:[%s2 + $0xb8] sm:$0xf]
      %v446 = vld [vmem:[%s2 + $0xbc] sm:$0xf]
      %v447 = vld [vmem:[%s2 + $0xc0] sm:$0xf]
      %v448 = vld [vmem:[%s2 + $0xc4] sm:$0xf]
      %v449 = vld [vmem:[%s2 + $0xc8] sm:$0xf]
      %v450 = vld [vmem:[%s2 + $0xcc] sm:$0xf]
      %v451 = vld [vmem:[%s2 + $0xd0] sm:$0xf]
      %v452 = vld [vmem:[%s2 + $0xd4] sm:$0xf]
      %v453 = vld [vmem:[%s3] sm:$0x1]
      %v455 = vlaneseq
      %v456 = vshrl.u32 %v455, 7
      %v457 = vsub.s32 0, %v456
      %v458 = vrot.slane %v453, %v457
      %v524 = vunpack.c.l.b16 %v335
      %v525 = vunpack.c.h.b16 %v335
      %v526 = vunpack.c.l.b16 %v336
      %v527 = vunpack.c.h.b16 %v336
      %v528 = vunpack.c.l.b16 %v337
      %v529 = vunpack.c.h.b16 %v337
      %v530 = vunpack.c.l.b16 %v338
      %v531 = vunpack.c.h.b16 %v338
      %v532 = vunpack.c.l.b16 %v339
      %v533 = vunpack.c.h.b16 %v339
      %v534 = vunpack.c.l.b16 %v340
      %v535 = vunpack.c.h.b16 %v340
      %v536 = vunpack.c.l.b16 %v341
      %v537 = vunpack.c.h.b16 %v341
      %v538 = vunpack.c.l.b16 %v342
      %v539 = vunpack.c.h.b16 %v342
      %v540 = vunpack.c.l.b16 %v343
      %v541 = vunpack.c.h.b16 %v343
      %v542 = vunpack.c.l.b16 %v344
      %v543 = vunpack.c.h.b16 %v344
      %v544 = vunpack.c.l.b16 %v345
      %v545 = vunpack.c.h.b16 %v345
      %v546 = vunpack.c.l.b16 %v346
      %v547 = vunpack.c.h.b16 %v346
      %v548 = vunpack.c.l.b16 %v347
      %v549 = vunpack.c.h.b16 %v347
      %v550 = vunpack.c.l.b16 %v348
      %v551 = vunpack.c.h.b16 %v348
      %v552 = vunpack.c.l.b16 %v349
      %v553 = vunpack.c.h.b16 %v349
      %v554 = vunpack.c.l.b16 %v350
      %v555 = vunpack.c.h.b16 %v350
      %v556 = vunpack.c.l.b16 %v351
      %v557 = vunpack.c.h.b16 %v351
      %v558 = vunpack.c.l.b16 %v352
      %v559 = vunpack.c.h.b16 %v352
      %v560 = vunpack.c.l.b16 %v353
      %v561 = vunpack.c.h.b16 %v353
      %v562 = vunpack.c.l.b16 %v354
      %v563 = vunpack.c.h.b16 %v354
      %v564 = vunpack.c.l.b16 %v355
      %v565 = vunpack.c.h.b16 %v355
      %v566 = vunpack.c.l.b16 %v356
      %v567 = vunpack.c.h.b16 %v356
      %v568 = vunpack.c.l.b16 %v357
      %v569 = vunpack.c.h.b16 %v357
      %v570 = vunpack.c.l.b16 %v358
      %v571 = vunpack.c.h.b16 %v358
      %v572 = vunpack.c.l.b16 %v359
      %v573 = vunpack.c.h.b16 %v359
      %v574 = vunpack.c.l.b16 %v360
      %v575 = vunpack.c.h.b16 %v360
      %v576 = vunpack.c.l.b16 %v361
      %v577 = vunpack.c.h.b16 %v361
      %v578 = vunpack.c.l.b16 %v362
      %v579 = vunpack.c.h.b16 %v362
      %v580 = vunpack.c.l.b16 %v363
      %v581 = vunpack.c.h.b16 %v363
      %v582 = vunpack.c.l.b16 %v364
      %v583 = vunpack.c.h.b16 %v364
      %v584 = vunpack.c.l.b16 %v365
      %v585 = vunpack.c.h.b16 %v365
      %v586 = vunpack.c.l.b16 %v366
      %v587 = vunpack.c.h.b16 %v366
      %v588 = vunpack.c.l.b16 %v367
      %v589 = vunpack.c.h.b16 %v367
      %v590 = vunpack.c.l.b16 %v368
      %v591 = vunpack.c.h.b16 %v368
      %v592 = vunpack.c.l.b16 %v369
      %v593 = vunpack.c.h.b16 %v369
      %v594 = vunpack.c.l.b16 %v370
      %v595 = vunpack.c.h.b16 %v370
      %v596 = vunpack.c.l.b16 %v371
      %v597 = vunpack.c.h.b16 %v371
      %v598 = vunpack.c.l.b16 %v372
      %v599 = vunpack.c.h.b16 %v372
      %v600 = vunpack.c.l.b16 %v373
      %v601 = vunpack.c.h.b16 %v373
      %v602 = vunpack.c.l.b16 %v374
      %v603 = vunpack.c.h.b16 %v374
      %v604 = vunpack.c.l.b16 %v375
      %v605 = vunpack.c.h.b16 %v375
      %v606 = vunpack.c.l.b16 %v376
      %v607 = vunpack.c.h.b16 %v376
      %v608 = vunpack.c.l.b16 %v377
      %v609 = vunpack.c.h.b16 %v377
      %v610 = vunpack.c.l.b16 %v378
      %v611 = vunpack.c.h.b16 %v378
      %v612 = vunpack.c.l.b16 %v379
      %v613 = vunpack.c.h.b16 %v379
      %v614 = vunpack.c.l.b16 %v380
      %v615 = vunpack.c.h.b16 %v380
      %v616 = vunpack.c.l.b16 %v381
      %v617 = vunpack.c.h.b16 %v381
      %v618 = vunpack.c.l.b16 %v382
      %v619 = vunpack.c.h.b16 %v382
      %v620 = vunpack.c.l.b16 %v383
      %v621 = vunpack.c.h.b16 %v383
      %v622 = vunpack.c.l.b16 %v384
      %v623 = vunpack.c.h.b16 %v384
      %v624 = vunpack.c.l.b16 %v385
      %v625 = vunpack.c.h.b16 %v385
      %v626 = vunpack.c.l.b16 %v386
      %v627 = vunpack.c.h.b16 %v386
      %v628 = vunpack.c.l.b16 %v387
      %v629 = vunpack.c.h.b16 %v387
      %v630 = vunpack.c.l.b16 %v388
      %v631 = vunpack.c.h.b16 %v388
      %v632 = vunpack.c.l.b16 %v389
      %v633 = vunpack.c.h.b16 %v389
      %v634 = vunpack.c.l.b16 %v390
      %v635 = vunpack.c.h.b16 %v390
      %v636 = vunpack.c.l.b16 %v391
      %v637 = vunpack.c.h.b16 %v391
      %v638 = vunpack.c.l.b16 %v392
      %v639 = vunpack.c.h.b16 %v392
      %v640 = vunpack.c.l.b16 %v393
      %v641 = vunpack.c.h.b16 %v393
      %v642 = vunpack.c.l.b16 %v394
      %v643 = vunpack.c.h.b16 %v394
      %v644 = vunpack.c.l.b16 %v395
      %v645 = vunpack.c.h.b16 %v395
      %v646 = vunpack.c.l.b16 %v396
      %v647 = vunpack.c.h.b16 %v396
      %v648 = vunpack.c.l.b16 %v397
      %v649 = vunpack.c.h.b16 %v397
      %v650 = vunpack.c.l.b16 %v398
      %v651 = vunpack.c.h.b16 %v398
      %v652 = vpack.c.b16 %v528, %v524
      %v653 = vpack.c.b16 %v529, %v525
      %v654 = vpack.c.b16 %v530, %v526
      %v655 = vpack.c.b16 %v531, %v527
      %v656 = vpack.c.b16 %v536, %v532
      %v657 = vpack.c.b16 %v537, %v533
      %v658 = vpack.c.b16 %v538, %v534
      %v659 = vpack.c.b16 %v539, %v535
      %v660 = vpack.c.b16 %v544, %v540
      %v661 = vpack.c.b16 %v545, %v541
      %v662 = vpack.c.b16 %v546, %v542
      %v663 = vpack.c.b16 %v547, %v543
      %v664 = vpack.c.b16 %v552, %v548
      %v665 = vpack.c.b16 %v553, %v549
      %v666 = vpack.c.b16 %v554, %v550
      %v667 = vpack.c.b16 %v555, %v551
      %v668 = vpack.c.b16 %v560, %v556
      %v669 = vpack.c.b16 %v561, %v557
      %v670 = vpack.c.b16 %v562, %v558
      %v671 = vpack.c.b16 %v563, %v559
      %v672 = vpack.c.b16 %v568, %v564
      %v673 = vpack.c.b16 %v569, %v565
      %v674 = vpack.c.b16 %v570, %v566
      %v675 = vpack.c.b16 %v571, %v567
      %v676 = vpack.c.b16 %v576, %v572
      %v677 = vpack.c.b16 %v577, %v573
      %v678 = vpack.c.b16 %v578, %v574
      %v679 = vpack.c.b16 %v579, %v575
      %v680 = vpack.c.b16 %v584, %v580
      %v681 = vpack.c.b16 %v585, %v581
      %v682 = vpack.c.b16 %v586, %v582
      %v683 = vpack.c.b16 %v587, %v583
      %v684 = vpack.c.b16 %v592, %v588
      %v685 = vpack.c.b16 %v593, %v589
      %v686 = vpack.c.b16 %v594, %v590
      %v687 = vpack.c.b16 %v595, %v591
      %v688 = vpack.c.b16 %v600, %v596
      %v689 = vpack.c.b16 %v601, %v597
      %v690 = vpack.c.b16 %v602, %v598
      %v691 = vpack.c.b16 %v603, %v599
      %v692 = vpack.c.b16 %v608, %v604
      %v693 = vpack.c.b16 %v609, %v605
      %v694 = vpack.c.b16 %v610, %v606
      %v695 = vpack.c.b16 %v611, %v607
      %v696 = vpack.c.b16 %v616, %v612
      %v697 = vpack.c.b16 %v617, %v613
      %v698 = vpack.c.b16 %v618, %v614
      %v699 = vpack.c.b16 %v619, %v615
      %v700 = vpack.c.b16 %v624, %v620
      %v701 = vpack.c.b16 %v625, %v621
      %v702 = vpack.c.b16 %v626, %v622
      %v703 = vpack.c.b16 %v627, %v623
      %v704 = vpack.c.b16 %v632, %v628
      %v705 = vpack.c.b16 %v633, %v629
      %v706 = vpack.c.b16 %v634, %v630
      %v707 = vpack.c.b16 %v635, %v631
      %v708 = vpack.c.b16 %v640, %v636
      %v709 = vpack.c.b16 %v641, %v637
      %v710 = vpack.c.b16 %v642, %v638
      %v711 = vpack.c.b16 %v643, %v639
      %v712 = vpack.c.b16 %v648, %v644
      %v713 = vpack.c.b16 %v649, %v645
      %v714 = vpack.c.b16 %v650, %v646
      %v715 = vpack.c.b16 %v651, %v647
      %v818 = vunpack.c.l.b16 %v399
      %v819 = vunpack.c.l.b16 %v400
      %v820 = vunpack.c.l.b16 %v401
      %v821 = vunpack.c.l.b16 %v402
      %v822 = vunpack.c.l.b16 %v403
      %v823 = vunpack.c.l.b16 %v404
      %v824 = vunpack.c.l.b16 %v405
      %v825 = vunpack.c.l.b16 %v406
      %v826 = vunpack.c.l.b16 %v407
      %v827 = vunpack.c.l.b16 %v408
      %v828 = vunpack.c.l.b16 %v409
      %v829 = vunpack.c.l.b16 %v410
      %v830 = vunpack.c.l.b16 %v411
      %v831 = vunpack.c.l.b16 %v412
      %v832 = vunpack.c.l.b16 %v413
      %v833 = vunpack.c.l.b16 %v414
      %v834 = vunpack.c.l.b16 %v415
      %v835 = vunpack.c.l.b16 %v416
      %v836 = vunpack.c.l.b16 %v417
      %v837 = vunpack.c.l.b16 %v418
      %v838 = vunpack.c.l.b16 %v419
      %v839 = vunpack.c.l.b16 %v420
      %v840 = vunpack.c.l.b16 %v421
      %v841 = vunpack.c.l.b16 %v422
      %v842 = vunpack.c.l.b16 %v423
      %v843 = vunpack.c.l.b16 %v424
      %v844 = vunpack.c.l.b16 %v425
      %v845 = vunpack.c.l.b16 %v426
      %v846 = vunpack.c.l.b16 %v427
      %v847 = vunpack.c.l.b16 %v428
      %v848 = vunpack.c.l.b16 %v429
      %v849 = vunpack.c.l.b16 %v430
      %v850 = vunpack.c.l.b16 %v431
      %v851 = vunpack.c.l.b16 %v432
      %v852 = vunpack.c.l.b16 %v433
      %v853 = vunpack.c.l.b16 %v434
      %v854 = vunpack.c.l.b16 %v435
      %v855 = vunpack.c.l.b16 %v436
      %v856 = vunpack.c.l.b16 %v437
      %v857 = vunpack.c.l.b16 %v438
      %v858 = vunpack.c.l.b16 %v439
      %v859 = vunpack.c.l.b16 %v440
      %v860 = vunpack.c.l.b16 %v441
      %v861 = vunpack.c.l.b16 %v442
      %v862 = vunpack.c.l.b16 %v443
      %v863 = vunpack.c.l.b16 %v444
      %v864 = vunpack.c.l.b16 %v445
      %v865 = vunpack.c.l.b16 %v446
      %v866 = vunpack.c.l.b16 %v447
      %v867 = vunpack.c.l.b16 %v448
      %v868 = vunpack.c.l.b16 %v449
      %v869 = vunpack.c.l.b16 %v450
      %v870 = vunpack.c.l.b16 %v451
      %v871 = vunpack.c.l.b16 %v452
      %v872 = vpack.c.b16 %v819, %v818
      %v873 = vpack.c.b16 %v821, %v820
      %v874 = vpack.c.b16 %v823, %v822
      %v875 = vpack.c.b16 %v825, %v824
      %v876 = vpack.c.b16 %v827, %v826
      %v877 = vpack.c.b16 %v829, %v828
      %v878 = vpack.c.b16 %v831, %v830
      %v879 = vpack.c.b16 %v833, %v832
      %v880 = vpack.c.b16 %v835, %v834
      %v881 = vpack.c.b16 %v837, %v836
      %v882 = vpack.c.b16 %v839, %v838
      %v883 = vpack.c.b16 %v841, %v840
      %v884 = vpack.c.b16 %v843, %v842
      %v885 = vpack.c.b16 %v845, %v844
      %v886 = vpack.c.b16 %v847, %v846
      %v887 = vpack.c.b16 %v849, %v848
      %v888 = vpack.c.b16 %v851, %v850
      %v889 = vpack.c.b16 %v853, %v852
      %v890 = vpack.c.b16 %v855, %v854
      %v891 = vpack.c.b16 %v857, %v856
      %v892 = vpack.c.b16 %v859, %v858
      %v893 = vpack.c.b16 %v861, %v860
      %v894 = vpack.c.b16 %v863, %v862
      %v895 = vpack.c.b16 %v865, %v864
      %v896 = vpack.c.b16 %v867, %v866
      %v897 = vpack.c.b16 %v869, %v868
      %v898 = vpack.c.b16 %v871, %v870
      %vm926 = vcmask 392192
      %v928 = vsel %vm926, %v655, 0
      %v931 = vsel %vm926, %v659, 0
      %v934 = vsel %vm926, %v663, 0
      %v937 = vsel %vm926, %v667, 0
      %v940 = vsel %vm926, %v671, 0
      %v943 = vsel %vm926, %v675, 0
      %v946 = vsel %vm926, %v679, 0
      %v949 = vsel %vm926, %v683, 0
      %v952 = vsel %vm926, %v687, 0
      %v955 = vsel %vm926, %v691, 0
      %v958 = vsel %vm926, %v695, 0
      %v961 = vsel %vm926, %v699, 0
      %v964 = vsel %vm926, %v703, 0
      %v967 = vsel %vm926, %v707, 0
      %v970 = vsel %vm926, %v711, 0
      %v973 = vsel %vm926, %v715, 0
      %975 = vmatprep.subr.bf16.mxu0 0
      %976 = vmatpush1.bf16.msra.mxu0 %v872
      %977 = vmatprep.subr.bf16.mxu0 0
      %978 = vmatpush1.bf16.msra.mxu0 %v873
      %979 = vmatprep.subr.bf16.mxu0 0
      %980 = vmatpush1.bf16.msra.mxu0 %v874
      %981 = vmatprep.subr.bf16.mxu0 0
      %982 = vmatpush1.bf16.msra.mxu0 %v875
      %983 = vmatprep.subr.bf16.mxu0 0
      %984 = vmatpush1.bf16.msra.mxu0 %v876
      %985 = vmatprep.subr.bf16.mxu0 0
      %986 = vmatpush1.bf16.msra.mxu0 %v877
      %987 = vmatprep.subr.bf16.mxu0 0
      %988 = vmatpush1.bf16.msra.mxu0 %v878
      %989 = vmatprep.subr.bf16.mxu0 0
      %990 = vmatpush1.bf16.msra.mxu0 %v879
      %991 = vmatprep.subr.bf16.mxu0 0
      %992 = vmatpush1.bf16.msra.mxu0 %v880
      %993 = vmatprep.subr.bf16.mxu0 0
      %994 = vmatpush1.bf16.msra.mxu0 %v881
      %995 = vmatprep.subr.bf16.mxu0 0
      %996 = vmatpush1.bf16.msra.mxu0 %v882
      %997 = vmatprep.subr.bf16.mxu0 0
      %998 = vmatpush1.bf16.msra.mxu0 %v883
      %999 = vmatprep.subr.bf16.mxu0 0
      %1000 = vmatpush1.bf16.msra.mxu0 %v884
      %1001 = vmatprep.subr.bf16.mxu0 0
      %1002 = vmatpush1.bf16.msra.mxu0 %v885
      %1003 = vmatprep.subr.bf16.mxu0 0
      %1004 = vmatpush1.bf16.msra.mxu0 %v886
      %1005 = vmatprep.subr.bf16.mxu0 0
      %1006 = vmatpush1.bf16.msra.mxu0 %v887
      %1007 = vmatprep.mubr.bf16.mxu0 %v653
      %1008 = vmatmul.mubr.bf16.gmra.mrb[0].mxu0 %v652
      %v1009 = vpop.f32.mrb[0].mxu0
      %v1010 = vadd.f32 %v458, %v1009
      %v1011 = vpop.f32.mrb[0].mxu0
      %v1012 = vpop.f32.mrb[0].mxu0
      %v1013 = vadd.f32 %v458, %v1012
      %v1014 = vpop.f32.mrb[0].mxu0
      %1015 = vmatprep.mubr.bf16.mxu0 %v657
      %1016 = vmatmul.mubr.bf16.gmra.mrb[0].mxu0 %v656
      %v1017 = vpop.f32.mrb[0].mxu0
      %v1018 = vadd.f32 %v458, %v1017
      %v1019 = vpop.f32.mrb[0].mxu0
      %v1020 = vpop.f32.mrb[0].mxu0
      %v1021 = vadd.f32 %v458, %v1020
      %v1022 = vpop.f32.mrb[0].mxu0
      %1023 = vmatprep.mubr.bf16.mxu0 %v661
      %1024 = vmatmul.mubr.bf16.gmra.mrb[0].mxu0 %v660
      %v1025 = vpop.f32.mrb[0].mxu0
      %v1026 = vadd.f32 %v458, %v1025
      %v1027 = vpop.f32.mrb[0].mxu0
      %v1028 = vpop.f32.mrb[0].mxu0
      %v1029 = vadd.f32 %v458, %v1028
      %v1030 = vpop.f32.mrb[0].mxu0
      %1031 = vmatprep.mubr.bf16.mxu0 %v665
      %1032 = vmatmul.mubr.bf16.gmra.mrb[0].mxu0 %v664
      %v1033 = vpop.f32.mrb[0].mxu0
      %v1034 = vadd.f32 %v458, %v1033
      %v1035 = vpop.f32.mrb[0].mxu0
      %v1036 = vpop.f32.mrb[0].mxu0
      %v1037 = vadd.f32 %v458, %v1036
      %v1038 = vpop.f32.mrb[0].mxu0
      %1039 = vmatprep.mubr.bf16.mxu0 %v669
      %1040 = vmatmul.mubr.bf16.gmra.mrb[0].mxu0 %v668
      %v1041 = vpop.f32.mrb[0].mxu0
      %v1042 = vadd.f32 %v458, %v1041
      %v1043 = vpop.f32.mrb[0].mxu0
      %v1044 = vpop.f32.mrb[0].mxu0
      %v1045 = vadd.f32 %v458, %v1044
      %v1046 = vpop.f32.mrb[0].mxu0
      %1047 = vmatprep.mubr.bf16.mxu0 %v673
      %1048 = vmatmul.mubr.bf16.gmra.mrb[0].mxu0 %v672
      %v1049 = vpop.f32.mrb[0].mxu0
      %v1050 = vadd.f32 %v458, %v1049
      %v1051 = vpop.f32.mrb[0].mxu0
      %v1052 = vpop.f32.mrb[0].mxu0
      %v1053 = vadd.f32 %v458, %v1052
      %v1054 = vpop.f32.mrb[0].mxu0
      %1055 = vmatprep.mubr.bf16.mxu0 %v677
      %1056 = vmatmul.mubr.bf16.gmra.mrb[0].mxu0 %v676
      %v1057 = vpop.f32.mrb[0].mxu0
      %v1058 = vadd.f32 %v458, %v1057
      %v1059 = vpop.f32.mrb[0].mxu0
      %v1060 = vpop.f32.mrb[0].mxu0
      %v1061 = vadd.f32 %v458, %v1060
      %v1062 = vpop.f32.mrb[0].mxu0
      %1063 = vmatprep.mubr.bf16.mxu0 %v681
      %1064 = vmatmul.mubr.bf16.gmra.mrb[0].mxu0 %v680
      %v1065 = vpop.f32.mrb[0].mxu0
      %v1066 = vadd.f32 %v458, %v1065
      %v1067 = vpop.f32.mrb[0].mxu0
      %v1068 = vpop.f32.mrb[0].mxu0
      %v1069 = vadd.f32 %v458, %v1068
      %v1070 = vpop.f32.mrb[0].mxu0
      %1071 = vmatprep.mubr.bf16.mxu0 %v685
      %1072 = vmatmul.mubr.bf16.gmra.mrb[0].mxu0 %v684
      %v1073 = vpop.f32.mrb[0].mxu0
      %v1074 = vadd.f32 %v458, %v1073
      %v1075 = vpop.f32.mrb[0].mxu0
      %v1076 = vpop.f32.mrb[0].mxu0
      %v1077 = vadd.f32 %v458, %v1076
      %v1078 = vpop.f32.mrb[0].mxu0
      %1079 = vmatprep.mubr.bf16.mxu0 %v689
      %1080 = vmatmul.mubr.bf16.gmra.mrb[0].mxu0 %v688
      %v1081 = vpop.f32.mrb[0].mxu0
      %v1082 = vadd.f32 %v458, %v1081
      %v1083 = vpop.f32.mrb[0].mxu0
      %v1084 = vpop.f32.mrb[0].mxu0
      %v1085 = vadd.f32 %v458, %v1084
      %v1086 = vpop.f32.mrb[0].mxu0
      %1087 = vmatprep.mubr.bf16.mxu0 %v693
      %1088 = vmatmul.mubr.bf16.gmra.mrb[0].mxu0 %v692
      %v1089 = vpop.f32.mrb[0].mxu0
      %v1090 = vadd.f32 %v458, %v1089
      %v1091 = vpop.f32.mrb[0].mxu0
      %v1092 = vpop.f32.mrb[0].mxu0
      %v1093 = vadd.f32 %v458, %v1092
      %v1094 = vpop.f32.mrb[0].mxu0
      %1095 = vmatprep.mubr.bf16.mxu0 %v697
      %1096 = vmatmul.mubr.bf16.gmra.mrb[0].mxu0 %v696
      %v1097 = vpop.f32.mrb[0].mxu0
      %v1098 = vadd.f32 %v458, %v1097
      %v1099 = vpop.f32.mrb[0].mxu0
      %v1100 = vpop.f32.mrb[0].mxu0
      %v1101 = vadd.f32 %v458, %v1100
      %v1102 = vpop.f32.mrb[0].mxu0
      %1103 = vmatprep.mubr.bf16.mxu0 %v701
      %1104 = vmatmul.mubr.bf16.gmra.mrb[0].mxu0 %v700
      %v1105 = vpop.f32.mrb[0].mxu0
      %v1106 = vadd.f32 %v458, %v1105
      %v1107 = vpop.f32.mrb[0].mxu0
      %v1108 = vpop.f32.mrb[0].mxu0
      %v1109 = vadd.f32 %v458, %v1108
      %v1110 = vpop.f32.mrb[0].mxu0
      %1111 = vmatprep.mubr.bf16.mxu0 %v705
      %1112 = vmatmul.mubr.bf16.gmra.mrb[0].mxu0 %v704
      %v1113 = vpop.f32.mrb[0].mxu0
      %v1114 = vadd.f32 %v458, %v1113
      %v1115 = vpop.f32.mrb[0].mxu0
      %v1116 = vpop.f32.mrb[0].mxu0
      %v1117 = vadd.f32 %v458, %v1116
      %v1118 = vpop.f32.mrb[0].mxu0
      %1119 = vmatprep.mubr.bf16.mxu0 %v709
      %1120 = vmatmul.mubr.bf16.gmra.mrb[0].mxu0 %v708
      %v1121 = vpop.f32.mrb[0].mxu0
      %v1122 = vadd.f32 %v458, %v1121
      %v1123 = vpop.f32.mrb[0].mxu0
      %v1124 = vpop.f32.mrb[0].mxu0
      %v1125 = vadd.f32 %v458, %v1124
      %v1126 = vpop.f32.mrb[0].mxu0
      %1127 = vmatprep.mubr.bf16.mxu0 %v713
      %1128 = vmatmul.mubr.bf16.gmra.mrb[0].mxu0 %v712
      %v1129 = vpop.f32.mrb[0].mxu0
      %v1130 = vadd.f32 %v458, %v1129
      %v1131 = vpop.f32.mrb[0].mxu0
      %v1132 = vpop.f32.mrb[0].mxu0
      %v1133 = vadd.f32 %v458, %v1132
      %v1134 = vpop.f32.mrb[0].mxu0
      %1135 = vdwg.mxu0
      %1136 = vmatprep.subr.bf16.mxu0 0
      %1137 = vmatpush1.bf16.msra.mxu0 %v888
      %1138 = vmatprep.subr.bf16.mxu0 0
      %1139 = vmatpush1.bf16.msra.mxu0 %v889
      %1140 = vmatprep.subr.bf16.mxu0 0
      %1141 = vmatpush1.bf16.msra.mxu0 %v890
      %1142 = vmatprep.subr.bf16.mxu0 0
      %1143 = vmatpush1.bf16.msra.mxu0 %v891
      %1144 = vmatprep.subr.bf16.mxu0 0
      %1145 = vmatpush1.bf16.msra.mxu0 %v892
      %1146 = vmatprep.subr.bf16.mxu0 0
      %1147 = vmatpush1.bf16.msra.mxu0 %v893
      %1148 = vmatprep.subr.bf16.mxu0 0
      %1149 = vmatpush1.bf16.msra.mxu0 %v894
      %1150 = vmatprep.subr.bf16.mxu0 0
      %1151 = vmatpush1.bf16.msra.mxu0 %v895
      %1152 = vmatprep.subr.bf16.mxu0 0
      %1153 = vmatpush1.bf16.msra.mxu0 %v896
      %1154 = vmatprep.subr.bf16.mxu0 0
      %1155 = vmatpush1.bf16.msra.mxu0 %v897
      %1156 = vmatprep.subr.bf16.mxu0 0
      %1157 = vmatpush1.bf16.msra.mxu0 %v898
      %1158 = vmatprep.subr.bf16.mxu0 0
      %1159 = vmatpush1.bf16.msra.mxu0 0
      %1160 = vmatprep.subr.bf16.mxu0 0
      %1161 = vmatpush1.bf16.msra.mxu0 0
      %1162 = vmatprep.subr.bf16.mxu0 0
      %1163 = vmatpush1.bf16.msra.mxu0 0
      %1164 = vmatprep.subr.bf16.mxu0 0
      %1165 = vmatpush1.bf16.msra.mxu0 0
      %1166 = vmatprep.subr.bf16.mxu0 0
      %1167 = vmatpush1.bf16.msra.mxu0 0
      %1168 = vmatprep.mubr.bf16.mxu0 %v928
      %1169 = vmatmul.mubr.bf16.gmra.mrb[0].mxu0 %v654
      %v1170 = vpop.f32.mrb[0].mxu0
      %v1171 = vadd.f32 %v1010, %v1170
      %v1172 = vpop.f32.mrb[0].mxu0
      %v1173 = vpop.f32.mrb[0].mxu0
      %v1174 = vadd.f32 %v1013, %v1173
      %v1175 = vpop.f32.mrb[0].mxu0
      %1176 = vmatprep.mubr.bf16.mxu0 %v931
      %1177 = vmatmul.mubr.bf16.gmra.mrb[0].mxu0 %v658
      %v1178 = vpop.f32.mrb[0].mxu0
      %v1179 = vadd.f32 %v1018, %v1178
      %v1180 = vpop.f32.mrb[0].mxu0
      %v1181 = vpop.f32.mrb[0].mxu0
      %v1182 = vadd.f32 %v1021, %v1181
      %v1183 = vpop.f32.mrb[0].mxu0
      %1184 = vmatprep.mubr.bf16.mxu0 %v934
      %1185 = vmatmul.mubr.bf16.gmra.mrb[0].mxu0 %v662
      %v1186 = vpop.f32.mrb[0].mxu0
      %v1187 = vadd.f32 %v1026, %v1186
      %v1188 = vpop.f32.mrb[0].mxu0
      %v1189 = vpop.f32.mrb[0].mxu0
      %v1190 = vadd.f32 %v1029, %v1189
      %v1191 = vpop.f32.mrb[0].mxu0
      %1192 = vmatprep.mubr.bf16.mxu0 %v937
      %1193 = vmatmul.mubr.bf16.gmra.mrb[0].mxu0 %v666
      %v1194 = vpop.f32.mrb[0].mxu0
      %v1195 = vadd.f32 %v1034, %v1194
      %v1196 = vpop.f32.mrb[0].mxu0
      %v1197 = vpop.f32.mrb[0].mxu0
      %v1198 = vadd.f32 %v1037, %v1197
      %v1199 = vpop.f32.mrb[0].mxu0
      %1200 = vmatprep.mubr.bf16.mxu0 %v940
      %1201 = vmatmul.mubr.bf16.gmra.mrb[0].mxu0 %v670
      %v1202 = vpop.f32.mrb[0].mxu0
      %v1203 = vadd.f32 %v1042, %v1202
      %v1204 = vpop.f32.mrb[0].mxu0
      %v1205 = vpop.f32.mrb[0].mxu0
      %v1206 = vadd.f32 %v1045, %v1205
      %v1207 = vpop.f32.mrb[0].mxu0
      %1208 = vmatprep.mubr.bf16.mxu0 %v943
      %1209 = vmatmul.mubr.bf16.gmra.mrb[0].mxu0 %v674
      %v1210 = vpop.f32.mrb[0].mxu0
      %v1211 = vadd.f32 %v1050, %v1210
      %v1212 = vpop.f32.mrb[0].mxu0
      %v1213 = vpop.f32.mrb[0].mxu0
      %v1214 = vadd.f32 %v1053, %v1213
      %v1215 = vpop.f32.mrb[0].mxu0
      %1216 = vmatprep.mubr.bf16.mxu0 %v946
      %1217 = vmatmul.mubr.bf16.gmra.mrb[0].mxu0 %v678
      %v1218 = vpop.f32.mrb[0].mxu0
      %v1219 = vadd.f32 %v1058, %v1218
      %v1220 = vpop.f32.mrb[0].mxu0
      %v1221 = vpop.f32.mrb[0].mxu0
      %v1222 = vadd.f32 %v1061, %v1221
      %v1223 = vpop.f32.mrb[0].mxu0
      %1224 = vmatprep.mubr.bf16.mxu0 %v949
      %1225 = vmatmul.mubr.bf16.gmra.mrb[0].mxu0 %v682
      %v1226 = vpop.f32.mrb[0].mxu0
      %v1227 = vadd.f32 %v1066, %v1226
      %v1228 = vpop.f32.mrb[0].mxu0
      %v1229 = vpop.f32.mrb[0].mxu0
      %v1230 = vadd.f32 %v1069, %v1229
      %v1231 = vpop.f32.mrb[0].mxu0
      %1232 = vmatprep.mubr.bf16.mxu0 %v952
      %1233 = vmatmul.mubr.bf16.gmra.mrb[0].mxu0 %v686
      %v1234 = vpop.f32.mrb[0].mxu0
      %v1235 = vadd.f32 %v1074, %v1234
      %v1236 = vpop.f32.mrb[0].mxu0
      %v1237 = vpop.f32.mrb[0].mxu0
      %v1238 = vadd.f32 %v1077, %v1237
      %v1239 = vpop.f32.mrb[0].mxu0
      %1240 = vmatprep.mubr.bf16.mxu0 %v955
      %1241 = vmatmul.mubr.bf16.gmra.mrb[0].mxu0 %v690
      %v1242 = vpop.f32.mrb[0].mxu0
      %v1243 = vadd.f32 %v1082, %v1242
      %v1244 = vpop.f32.mrb[0].mxu0
      %v1245 = vpop.f32.mrb[0].mxu0
      %v1246 = vadd.f32 %v1085, %v1245
      %v1247 = vpop.f32.mrb[0].mxu0
      %1248 = vmatprep.mubr.bf16.mxu0 %v958
      %1249 = vmatmul.mubr.bf16.gmra.mrb[0].mxu0 %v694
      %v1250 = vpop.f32.mrb[0].mxu0
      %v1251 = vadd.f32 %v1090, %v1250
      %v1252 = vpop.f32.mrb[0].mxu0
      %v1253 = vpop.f32.mrb[0].mxu0
      %v1254 = vadd.f32 %v1093, %v1253
      %v1255 = vpop.f32.mrb[0].mxu0
      %1256 = vmatprep.mubr.bf16.mxu0 %v961
      %1257 = vmatmul.mubr.bf16.gmra.mrb[0].mxu0 %v698
      %v1258 = vpop.f32.mrb[0].mxu0
      %v1259 = vadd.f32 %v1098, %v1258
      %v1260 = vpop.f32.mrb[0].mxu0
      %v1261 = vpop.f32.mrb[0].mxu0
      %v1262 = vadd.f32 %v1101, %v1261
      %v1263 = vpop.f32.mrb[0].mxu0
      %1264 = vmatprep.mubr.bf16.mxu0 %v964
      %1265 = vmatmul.mubr.bf16.gmra.mrb[0].mxu0 %v702
      %v1266 = vpop.f32.mrb[0].mxu0
      %v1267 = vadd.f32 %v1106, %v1266
      %v1268 = vpop.f32.mrb[0].mxu0
      %v1269 = vpop.f32.mrb[0].mxu0
      %v1270 = vadd.f32 %v1109, %v1269
      %v1271 = vpop.f32.mrb[0].mxu0
      %1272 = vmatprep.mubr.bf16.mxu0 %v967
      %1273 = vmatmul.mubr.bf16.gmra.mrb[0].mxu0 %v706
      %v1274 = vpop.f32.mrb[0].mxu0
      %v1275 = vadd.f32 %v1114, %v1274
      %v1276 = vpop.f32.mrb[0].mxu0
      %v1277 = vpop.f32.mrb[0].mxu0
      %v1278 = vadd.f32 %v1117, %v1277
      %v1279 = vpop.f32.mrb[0].mxu0
      %1280 = vmatprep.mubr.bf16.mxu0 %v970
      %1281 = vmatmul.mubr.bf16.gmra.mrb[0].mxu0 %v710
      %v1282 = vpop.f32.mrb[0].mxu0
      %v1283 = vadd.f32 %v1122, %v1282
      %v1284 = vpop.f32.mrb[0].mxu0
      %v1285 = vpop.f32.mrb[0].mxu0
      %v1286 = vadd.f32 %v1125, %v1285
      %v1287 = vpop.f32.mrb[0].mxu0
      %1288 = vmatprep.mubr.bf16.mxu0 %v973
      %1289 = vmatmul.mubr.bf16.gmra.mrb[0].mxu0 %v714
      %v1290 = vpop.f32.mrb[0].mxu0
      %v1291 = vadd.f32 %v1130, %v1290
      %v1292 = vpop.f32.mrb[0].mxu0
      %v1293 = vpop.f32.mrb[0].mxu0
      %v1294 = vadd.f32 %v1133, %v1293
      %v1295 = vpop.f32.mrb[0].mxu0
      %1296 = vdwg.mxu0
      %v1297 = vmax.f32 %v1171, 0.0
      %v1298 = vmax.f32 %v1174, 0.0
      %v1299 = vmax.f32 %v1179, 0.0
      %v1300 = vmax.f32 %v1182, 0.0
      %v1301 = vmax.f32 %v1187, 0.0
      %v1302 = vmax.f32 %v1190, 0.0
      %v1303 = vmax.f32 %v1195, 0.0
      %v1304 = vmax.f32 %v1198, 0.0
      %v1305 = vmax.f32 %v1203, 0.0
      %v1306 = vmax.f32 %v1206, 0.0
      %v1307 = vmax.f32 %v1211, 0.0
      %v1308 = vmax.f32 %v1214, 0.0
      %v1309 = vmax.f32 %v1219, 0.0
      %v1310 = vmax.f32 %v1222, 0.0
      %v1311 = vmax.f32 %v1227, 0.0
      %v1312 = vmax.f32 %v1230, 0.0
      %v1313 = vmax.f32 %v1235, 0.0
      %v1314 = vmax.f32 %v1238, 0.0
      %v1315 = vmax.f32 %v1243, 0.0
      %v1316 = vmax.f32 %v1246, 0.0
      %v1317 = vmax.f32 %v1251, 0.0
      %v1318 = vmax.f32 %v1254, 0.0
      %v1319 = vmax.f32 %v1259, 0.0
      %v1320 = vmax.f32 %v1262, 0.0
      %v1321 = vmax.f32 %v1267, 0.0
      %v1322 = vmax.f32 %v1270, 0.0
      %v1323 = vmax.f32 %v1275, 0.0
      %v1324 = vmax.f32 %v1278, 0.0
      %v1325 = vmax.f32 %v1283, 0.0
      %v1326 = vmax.f32 %v1286, 0.0
      %v1327 = vmax.f32 %v1291, 0.0
      %v1328 = vmax.f32 %v1294, 0.0
      %v1329 = vpack.c.bf16 %v1298, %v1297
      %v1330 = vpack.c.bf16 %v1300, %v1299
      %v1331 = vpack.c.bf16 %v1302, %v1301
      %v1332 = vpack.c.bf16 %v1304, %v1303
      %v1333 = vpack.c.bf16 %v1306, %v1305
      %v1334 = vpack.c.bf16 %v1308, %v1307
      %v1335 = vpack.c.bf16 %v1310, %v1309
      %v1336 = vpack.c.bf16 %v1312, %v1311
      %v1337 = vpack.c.bf16 %v1314, %v1313
      %v1338 = vpack.c.bf16 %v1316, %v1315
      %v1339 = vpack.c.bf16 %v1318, %v1317
      %v1340 = vpack.c.bf16 %v1320, %v1319
      %v1341 = vpack.c.bf16 %v1322, %v1321
      %v1342 = vpack.c.bf16 %v1324, %v1323
      %v1343 = vpack.c.bf16 %v1326, %v1325
      %v1344 = vpack.c.bf16 %v1328, %v1327
      %v1345 = vld [vmem:[%s4] sm:$0xf]
      %v1346 = vld [vmem:[%s4 + $0x4] sm:$0xf]
      %v1347 = vld [vmem:[%s5] sm:$0x1]
      %v1349 = vlaneseq
      %v1350 = vshrl.u32 %v1349, 7
      %v1351 = vsub.s32 0, %v1350
      %v1352 = vrot.slane %v1347, %v1351
      %v1356 = vunpack.c.l.b16 %v1345
      %v1357 = vunpack.c.l.b16 %v1346
      %v1358 = vpack.c.b16 %v1357, %v1356
      %vm1360 = vcmask 130048
      %v1362 = vsel %vm1360, %v1329, 0
      %v1365 = vsel %vm1360, %v1330, 0
      %v1368 = vsel %vm1360, %v1331, 0
      %v1371 = vsel %vm1360, %v1332, 0
      %v1374 = vsel %vm1360, %v1333, 0
      %v1377 = vsel %vm1360, %v1334, 0
      %v1380 = vsel %vm1360, %v1335, 0
      %v1383 = vsel %vm1360, %v1336, 0
      %v1386 = vsel %vm1360, %v1337, 0
      %v1389 = vsel %vm1360, %v1338, 0
      %v1392 = vsel %vm1360, %v1339, 0
      %v1395 = vsel %vm1360, %v1340, 0
      %v1398 = vsel %vm1360, %v1341, 0
      %v1401 = vsel %vm1360, %v1342, 0
      %v1404 = vsel %vm1360, %v1343, 0
      %v1407 = vsel %vm1360, %v1344, 0
      %1409 = vmatprep.subr.bf16.mxu0 0
      %1410 = vmatpush1.bf16.msra.mxu0 %v1358
      %1411 = vmatprep.subr.bf16.mxu0 0
      %1412 = vmatpush1.bf16.msra.mxu0 0
      %1413 = vmatprep.subr.bf16.mxu0 0
      %1414 = vmatpush1.bf16.msra.mxu0 0
      %1415 = vmatprep.subr.bf16.mxu0 0
      %1416 = vmatpush1.bf16.msra.mxu0 0
      %1417 = vmatprep.subr.bf16.mxu0 0
      %1418 = vmatpush1.bf16.msra.mxu0 0
      %1419 = vmatprep.subr.bf16.mxu0 0
      %1420 = vmatpush1.bf16.msra.mxu0 0
      %1421 = vmatprep.subr.bf16.mxu0 0
      %1422 = vmatpush1.bf16.msra.mxu0 0
      %1423 = vmatprep.subr.bf16.mxu0 0
      %1424 = vmatpush1.bf16.msra.mxu0 0
      %1425 = vmatprep.subr.bf16.mxu0 0
      %1426 = vmatpush1.bf16.msra.mxu0 0
      %1427 = vmatprep.subr.bf16.mxu0 0
      %1428 = vmatpush1.bf16.msra.mxu0 0
      %1429 = vmatprep.subr.bf16.mxu0 0
      %1430 = vmatpush1.bf16.msra.mxu0 0
      %1431 = vmatprep.subr.bf16.mxu0 0
      %1432 = vmatpush1.bf16.msra.mxu0 0
      %1433 = vmatprep.subr.bf16.mxu0 0
      %1434 = vmatpush1.bf16.msra.mxu0 0
      %1435 = vmatprep.subr.bf16.mxu0 0
      %1436 = vmatpush1.bf16.msra.mxu0 0
      %1437 = vmatprep.subr.bf16.mxu0 0
      %1438 = vmatpush1.bf16.msra.mxu0 0
      %1439 = vmatprep.subr.bf16.mxu0 0
      %1440 = vmatpush1.bf16.msra.mxu0 0
      %1441 = vmatprep.mubr.bf16.mxu0 0
      %1442 = vmatmul.mubr.bf16.gmra.mrb[0].mxu0 %v1362
      %v1443 = vpop.f32.mrb[0].mxu0
      %v1444 = vadd.f32 %v1352, %v1443
      %v1445 = vpop.f32.mrb[0].mxu0
      %v1446 = vpop.f32.mrb[0].mxu0
      %v1447 = vadd.f32 %v1352, %v1446
      %v1448 = vpop.f32.mrb[0].mxu0
      %1449 = vmatprep.mubr.bf16.mxu0 0
      %1450 = vmatmul.mubr.bf16.gmra.mrb[0].mxu0 %v1365
      %v1451 = vpop.f32.mrb[0].mxu0
      %v1452 = vadd.f32 %v1352, %v1451
      %v1453 = vpop.f32.mrb[0].mxu0
      %v1454 = vpop.f32.mrb[0].mxu0
      %v1455 = vadd.f32 %v1352, %v1454
      %v1456 = vpop.f32.mrb[0].mxu0
      %1457 = vmatprep.mubr.bf16.mxu0 0
      %1458 = vmatmul.mubr.bf16.gmra.mrb[0].mxu0 %v1368
      %v1459 = vpop.f32.mrb[0].mxu0
      %v1460 = vadd.f32 %v1352, %v1459
      %v1461 = vpop.f32.mrb[0].mxu0
      %v1462 = vpop.f32.mrb[0].mxu0
      %v1463 = vadd.f32 %v1352, %v1462
      %v1464 = vpop.f32.mrb[0].mxu0
      %1465 = vmatprep.mubr.bf16.mxu0 0
      %1466 = vmatmul.mubr.bf16.gmra.mrb[0].mxu0 %v1371
      %v1467 = vpop.f32.mrb[0].mxu0
      %v1468 = vadd.f32 %v1352, %v1467
      %v1469 = vpop.f32.mrb[0].mxu0
      %v1470 = vpop.f32.mrb[0].mxu0
      %v1471 = vadd.f32 %v1352, %v1470
      %v1472 = vpop.f32.mrb[0].mxu0
      %1473 = vmatprep.mubr.bf16.mxu0 0
      %1474 = vmatmul.mubr.bf16.gmra.mrb[0].mxu0 %v1374
      %v1475 = vpop.f32.mrb[0].mxu0
      %v1476 = vadd.f32 %v1352, %v1475
      %v1477 = vpop.f32.mrb[0].mxu0
      %v1478 = vpop.f32.mrb[0].mxu0
      %v1479 = vadd.f32 %v1352, %v1478
      %v1480 = vpop.f32.mrb[0].mxu0
      %1481 = vmatprep.mubr.bf16.mxu0 0
      %1482 = vmatmul.mubr.bf16.gmra.mrb[0].mxu0 %v1377
      %v1483 = vpop.f32.mrb[0].mxu0
      %v1484 = vadd.f32 %v1352, %v1483
      %v1485 = vpop.f32.mrb[0].mxu0
      %v1486 = vpop.f32.mrb[0].mxu0
      %v1487 = vadd.f32 %v1352, %v1486
      %v1488 = vpop.f32.mrb[0].mxu0
      %1489 = vmatprep.mubr.bf16.mxu0 0
      %1490 = vmatmul.mubr.bf16.gmra.mrb[0].mxu0 %v1380
      %v1491 = vpop.f32.mrb[0].mxu0
      %v1492 = vadd.f32 %v1352, %v1491
      %v1493 = vpop.f32.mrb[0].mxu0
      %v1494 = vpop.f32.mrb[0].mxu0
      %v1495 = vadd.f32 %v1352, %v1494
      %v1496 = vpop.f32.mrb[0].mxu0
      %1497 = vmatprep.mubr.bf16.mxu0 0
      %1498 = vmatmul.mubr.bf16.gmra.mrb[0].mxu0 %v1383
      %v1499 = vpop.f32.mrb[0].mxu0
      %v1500 = vadd.f32 %v1352, %v1499
      %v1501 = vpop.f32.mrb[0].mxu0
      %v1502 = vpop.f32.mrb[0].mxu0
      %v1503 = vadd.f32 %v1352, %v1502
      %v1504 = vpop.f32.mrb[0].mxu0
      %1505 = vmatprep.mubr.bf16.mxu0 0
      %1506 = vmatmul.mubr.bf16.gmra.mrb[0].mxu0 %v1386
      %v1507 = vpop.f32.mrb[0].mxu0
      %v1508 = vadd.f32 %v1352, %v1507
      %v1509 = vpop.f32.mrb[0].mxu0
      %v1510 = vpop.f32.mrb[0].mxu0
      %v1511 = vadd.f32 %v1352, %v1510
      %v1512 = vpop.f32.mrb[0].mxu0
      %1513 = vmatprep.mubr.bf16.mxu0 0
      %1514 = vmatmul.mubr.bf16.gmra.mrb[0].mxu0 %v1389
      %v1515 = vpop.f32.mrb[0].mxu0
      %v1516 = vadd.f32 %v1352, %v1515
      %v1517 = vpop.f32.mrb[0].mxu0
      %v1518 = vpop.f32.mrb[0].mxu0
      %v1519 = vadd.f32 %v1352, %v1518
      %v1520 = vpop.f32.mrb[0].mxu0
      %1521 = vmatprep.mubr.bf16.mxu0 0
      %1522 = vmatmul.mubr.bf16.gmra.mrb[0].mxu0 %v1392
      %v1523 = vpop.f32.mrb[0].mxu0
      %v1524 = vadd.f32 %v1352, %v1523
      %v1525 = vpop.f32.mrb[0].mxu0
      %v1526 = vpop.f32.mrb[0].mxu0
      %v1527 = vadd.f32 %v1352, %v1526
      %v1528 = vpop.f32.mrb[0].mxu0
      %1529 = vmatprep.mubr.bf16.mxu0 0
      %1530 = vmatmul.mubr.bf16.gmra.mrb[0].mxu0 %v1395
      %v1531 = vpop.f32.mrb[0].mxu0
      %v1532 = vadd.f32 %v1352, %v1531
      %v1533 = vpop.f32.mrb[0].mxu0
      %v1534 = vpop.f32.mrb[0].mxu0
      %v1535 = vadd.f32 %v1352, %v1534
      %v1536 = vpop.f32.mrb[0].mxu0
      %1537 = vmatprep.mubr.bf16.mxu0 0
      %1538 = vmatmul.mubr.bf16.gmra.mrb[0].mxu0 %v1398
      %v1539 = vpop.f32.mrb[0].mxu0
      %v1540 = vadd.f32 %v1352, %v1539
      %v1541 = vpop.f32.mrb[0].mxu0
      %v1542 = vpop.f32.mrb[0].mxu0
      %v1543 = vadd.f32 %v1352, %v1542
      %v1544 = vpop.f32.mrb[0].mxu0
      %1545 = vmatprep.mubr.bf16.mxu0 0
      %1546 = vmatmul.mubr.bf16.gmra.mrb[0].mxu0 %v1401
      %v1547 = vpop.f32.mrb[0].mxu0
      %v1548 = vadd.f32 %v1352, %v1547
      %v1549 = vpop.f32.mrb[0].mxu0
      %v1550 = vpop.f32.mrb[0].mxu0
      %v1551 = vadd.f32 %v1352, %v1550
      %v1552 = vpop.f32.mrb[0].mxu0
      %1553 = vmatprep.mubr.bf16.mxu0 0
      %1554 = vmatmul.mubr.bf16.gmra.mrb[0].mxu0 %v1404
      %v1555 = vpop.f32.mrb[0].mxu0
      %v1556 = vadd.f32 %v1352, %v1555
      %v1557 = vpop.f32.mrb[0].mxu0
      %v1558 = vpop.f32.mrb[0].mxu0
      %v1559 = vadd.f32 %v1352, %v1558
      %v1560 = vpop.f32.mrb[0].mxu0
      %1561 = vmatprep.mubr.bf16.mxu0 0
      %1562 = vmatmul.mubr.bf16.gmra.mrb[0].mxu0 %v1407
      %v1563 = vpop.f32.mrb[0].mxu0
      %v1564 = vadd.f32 %v1352, %v1563
      %v1565 = vpop.f32.mrb[0].mxu0
      %v1566 = vpop.f32.mrb[0].mxu0
      %v1567 = vadd.f32 %v1352, %v1566
      %v1568 = vpop.f32.mrb[0].mxu0
      %1569 = vdwg.mxu0
      %v1570 = vld [vmem:[%s326] sm:$0xf]
      %v1571 = vld [vmem:[%s326 + $0x4] sm:$0xf]
      %v1572 = vld [vmem:[%s326 + $0x8] sm:$0xf]
      %v1573 = vld [vmem:[%s326 + $0xc] sm:$0xf]
      %v1574 = vld [vmem:[%s326 + $0x10] sm:$0xf]
      %v1575 = vld [vmem:[%s326 + $0x14] sm:$0xf]
      %v1576 = vld [vmem:[%s326 + $0x18] sm:$0xf]
      %v1577 = vld [vmem:[%s326 + $0x1c] sm:$0xf]
      %v1578 = vld [vmem:[%s326 + $0x20] sm:$0xf]
      %v1579 = vld [vmem:[%s326 + $0x24] sm:$0xf]
      %v1580 = vld [vmem:[%s326 + $0x28] sm:$0xf]
      %v1581 = vld [vmem:[%s326 + $0x2c] sm:$0xf]
      %v1582 = vld [vmem:[%s326 + $0x30] sm:$0xf]
      %v1583 = vld [vmem:[%s326 + $0x34] sm:$0xf]
      %v1584 = vld [vmem:[%s326 + $0x38] sm:$0xf]
      %v1585 = vld [vmem:[%s326 + $0x3c] sm:$0xf]
      %v1586 = vld [vmem:[%s326 + $0x40] sm:$0xf]
      %v1587 = vld [vmem:[%s326 + $0x44] sm:$0xf]
      %v1588 = vld [vmem:[%s326 + $0x48] sm:$0xf]
      %v1589 = vld [vmem:[%s326 + $0x4c] sm:$0xf]
      %v1590 = vld [vmem:[%s326 + $0x50] sm:$0xf]
      %v1591 = vld [vmem:[%s326 + $0x54] sm:$0xf]
      %v1592 = vld [vmem:[%s326 + $0x58] sm:$0xf]
      %v1593 = vld [vmem:[%s326 + $0x5c] sm:$0xf]
      %v1594 = vld [vmem:[%s326 + $0x60] sm:$0xf]
      %v1595 = vld [vmem:[%s326 + $0x64] sm:$0xf]
      %v1596 = vld [vmem:[%s326 + $0x68] sm:$0xf]
      %v1597 = vld [vmem:[%s326 + $0x6c] sm:$0xf]
      %v1598 = vld [vmem:[%s326 + $0x70] sm:$0xf]
      %v1599 = vld [vmem:[%s326 + $0x74] sm:$0xf]
      %v1600 = vld [vmem:[%s326 + $0x78] sm:$0xf]
      %v1601 = vld [vmem:[%s326 + $0x7c] sm:$0xf]
      %v1602 = vld [vmem:[%s6] sm:$0xf]
      %v1603 = vld [vmem:[%s6 + $0x4] sm:$0xf]
      %v1604 = vld [vmem:[%s6 + $0x8] sm:$0xf]
      %v1605 = vld [vmem:[%s6 + $0xc] sm:$0xf]
      %v1606 = vld [vmem:[%s7] sm:$0x1]
      %v1608 = vlaneseq
      %v1609 = vshrl.u32 %v1608, 7
      %v1610 = vsub.s32 0, %v1609
      %v1611 = vrot.slane %v1606, %v1610
      %v1645 = vunpack.c.l.b16 %v1570
      %v1646 = vunpack.c.l.b16 %v1571
      %v1647 = vunpack.c.l.b16 %v1572
      %v1648 = vunpack.c.l.b16 %v1573
      %v1649 = vunpack.c.l.b16 %v1574
      %v1650 = vunpack.c.l.b16 %v1575
      %v1651 = vunpack.c.l.b16 %v1576
      %v1652 = vunpack.c.l.b16 %v1577
      %v1653 = vunpack.c.l.b16 %v1578
      %v1654 = vunpack.c.l.b16 %v1579
      %v1655 = vunpack.c.l.b16 %v1580
      %v1656 = vunpack.c.l.b16 %v1581
      %v1657 = vunpack.c.l.b16 %v1582
      %v1658 = vunpack.c.l.b16 %v1583
      %v1659 = vunpack.c.l.b16 %v1584
      %v1660 = vunpack.c.l.b16 %v1585
      %v1661 = vunpack.c.l.b16 %v1586
      %v1662 = vunpack.c.l.b16 %v1587
      %v1663 = vunpack.c.l.b16 %v1588
      %v1664 = vunpack.c.l.b16 %v1589
      %v1665 = vunpack.c.l.b16 %v1590
      %v1666 = vunpack.c.l.b16 %v1591
      %v1667 = vunpack.c.l.b16 %v1592
      %v1668 = vunpack.c.l.b16 %v1593
      %v1669 = vunpack.c.l.b16 %v1594
      %v1670 = vunpack.c.l.b16 %v1595
      %v1671 = vunpack.c.l.b16 %v1596
      %v1672 = vunpack.c.l.b16 %v1597
      %v1673 = vunpack.c.l.b16 %v1598
      %v1674 = vunpack.c.l.b16 %v1599
      %v1675 = vunpack.c.l.b16 %v1600
      %v1676 = vunpack.c.l.b16 %v1601
      %v1677 = vpack.c.b16 %v1646, %v1645
      %v1678 = vpack.c.b16 %v1648, %v1647
      %v1679 = vpack.c.b16 %v1650, %v1649
      %v1680 = vpack.c.b16 %v1652, %v1651
      %v1681 = vpack.c.b16 %v1654, %v1653
      %v1682 = vpack.c.b16 %v1656, %v1655
      %v1683 = vpack.c.b16 %v1658, %v1657
      %v1684 = vpack.c.b16 %v1660, %v1659
      %v1685 = vpack.c.b16 %v1662, %v1661
      %v1686 = vpack.c.b16 %v1664, %v1663
      %v1687 = vpack.c.b16 %v1666, %v1665
      %v1688 = vpack.c.b16 %v1668, %v1667
      %v1689 = vpack.c.b16 %v1670, %v1669
      %v1690 = vpack.c.b16 %v1672, %v1671
      %v1691 = vpack.c.b16 %v1674, %v1673
      %v1692 = vpack.c.b16 %v1676, %v1675
      %v1697 = vunpack.c.l.b16 %v1602
      %v1698 = vunpack.c.l.b16 %v1603
      %v1699 = vunpack.c.l.b16 %v1604
      %v1700 = vunpack.c.l.b16 %v1605
      %v1701 = vpack.c.b16 %v1698, %v1697
      %v1702 = vpack.c.b16 %v1700, %v1699
      %vm1705 = vcmask 261120
      %v1707 = vsel %vm1705, %v1677, 0
      %v1710 = vsel %vm1705, %v1678, 0
      %v1713 = vsel %vm1705, %v1679, 0
      %v1716 = vsel %vm1705, %v1680, 0
      %v1719 = vsel %vm1705, %v1681, 0
      %v1722 = vsel %vm1705, %v1682, 0
      %v1725 = vsel %vm1705, %v1683, 0
      %v1728 = vsel %vm1705, %v1684, 0
      %v1731 = vsel %vm1705, %v1685, 0
      %v1734 = vsel %vm1705, %v1686, 0
      %v1737 = vsel %vm1705, %v1687, 0
      %v1740 = vsel %vm1705, %v1688, 0
      %v1743 = vsel %vm1705, %v1689, 0
      %v1746 = vsel %vm1705, %v1690, 0
      %v1749 = vsel %vm1705, %v1691, 0
      %v1752 = vsel %vm1705, %v1692, 0
      %1754 = vmatprep.subr.bf16.mxu0 0
      %1755 = vmatpush1.bf16.msra.mxu0 %v1701
      %1756 = vmatprep.subr.bf16.mxu0 0
      %1757 = vmatpush1.bf16.msra.mxu0 %v1702
      %1758 = vmatprep.subr.bf16.mxu0 0
      %1759 = vmatpush1.bf16.msra.mxu0 0
      %1760 = vmatprep.subr.bf16.mxu0 0
      %1761 = vmatpush1.bf16.msra.mxu0 0
      %1762 = vmatprep.subr.bf16.mxu0 0
      %1763 = vmatpush1.bf16.msra.mxu0 0
      %1764 = vmatprep.subr.bf16.mxu0 0
      %1765 = vmatpush1.bf16.msra.mxu0 0
      %1766 = vmatprep.subr.bf16.mxu0 0
      %1767 = vmatpush1.bf16.msra.mxu0 0
      %1768 = vmatprep.subr.bf16.mxu0 0
      %1769 = vmatpush1.bf16.msra.mxu0 0
      %1770 = vmatprep.subr.bf16.mxu0 0
      %1771 = vmatpush1.bf16.msra.mxu0 0
      %1772 = vmatprep.subr.bf16.mxu0 0
      %1773 = vmatpush1.bf16.msra.mxu0 0
      %1774 = vmatprep.subr.bf16.mxu0 0
      %1775 = vmatpush1.bf16.msra.mxu0 0
      %1776 = vmatprep.subr.bf16.mxu0 0
      %1777 = vmatpush1.bf16.msra.mxu0 0
      %1778 = vmatprep.subr.bf16.mxu0 0
      %1779 = vmatpush1.bf16.msra.mxu0 0
      %1780 = vmatprep.subr.bf16.mxu0 0
      %1781 = vmatpush1.bf16.msra.mxu0 0
      %1782 = vmatprep.subr.bf16.mxu0 0
      %1783 = vmatpush1.bf16.msra.mxu0 0
      %1784 = vmatprep.subr.bf16.mxu0 0
      %1785 = vmatpush1.bf16.msra.mxu0 0
      %1786 = vmatprep.mubr.bf16.mxu0 0
      %1787 = vmatmul.mubr.bf16.gmra.mrb[0].mxu0 %v1707
      %v1788 = vpop.f32.mrb[0].mxu0
      %v1789 = vadd.f32 %v1611, %v1788
      %v1790 = vpop.f32.mrb[0].mxu0
      %v1791 = vpop.f32.mrb[0].mxu0
      %v1792 = vadd.f32 %v1611, %v1791
      %v1793 = vpop.f32.mrb[0].mxu0
      %1794 = vmatprep.mubr.bf16.mxu0 0
      %1795 = vmatmul.mubr.bf16.gmra.mrb[0].mxu0 %v1710
      %v1796 = vpop.f32.mrb[0].mxu0
      %v1797 = vadd.f32 %v1611, %v1796
      %v1798 = vpop.f32.mrb[0].mxu0
      %v1799 = vpop.f32.mrb[0].mxu0
      %v1800 = vadd.f32 %v1611, %v1799
      %v1801 = vpop.f32.mrb[0].mxu0
      %1802 = vmatprep.mubr.bf16.mxu0 0
      %1803 = vmatmul.mubr.bf16.gmra.mrb[0].mxu0 %v1713
      %v1804 = vpop.f32.mrb[0].mxu0
      %v1805 = vadd.f32 %v1611, %v1804
      %v1806 = vpop.f32.mrb[0].mxu0
      %v1807 = vpop.f32.mrb[0].mxu0
      %v1808 = vadd.f32 %v1611, %v1807
      %v1809 = vpop.f32.mrb[0].mxu0
      %1810 = vmatprep.mubr.bf16.mxu0 0
      %1811 = vmatmul.mubr.bf16.gmra.mrb[0].mxu0 %v1716
      %v1812 = vpop.f32.mrb[0].mxu0
      %v1813 = vadd.f32 %v1611, %v1812
      %v1814 = vpop.f32.mrb[0].mxu0
      %v1815 = vpop.f32.mrb[0].mxu0
      %v1816 = vadd.f32 %v1611, %v1815
      %v1817 = vpop.f32.mrb[0].mxu0
      %1818 = vmatprep.mubr.bf16.mxu0 0
      %1819 = vmatmul.mubr.bf16.gmra.mrb[0].mxu0 %v1719
      %v1820 = vpop.f32.mrb[0].mxu0
      %v1821 = vadd.f32 %v1611, %v1820
      %v1822 = vpop.f32.mrb[0].mxu0
      %v1823 = vpop.f32.mrb[0].mxu0
      %v1824 = vadd.f32 %v1611, %v1823
      %v1825 = vpop.f32.mrb[0].mxu0
      %1826 = vmatprep.mubr.bf16.mxu0 0
      %1827 = vmatmul.mubr.bf16.gmra.mrb[0].mxu0 %v1722
      %v1828 = vpop.f32.mrb[0].mxu0
      %v1829 = vadd.f32 %v1611, %v1828
      %v1830 = vpop.f32.mrb[0].mxu0
      %v1831 = vpop.f32.mrb[0].mxu0
      %v1832 = vadd.f32 %v1611, %v1831
      %v1833 = vpop.f32.mrb[0].mxu0
      %1834 = vmatprep.mubr.bf16.mxu0 0
      %1835 = vmatmul.mubr.bf16.gmra.mrb[0].mxu0 %v1725
      %v1836 = vpop.f32.mrb[0].mxu0
      %v1837 = vadd.f32 %v1611, %v1836
      %v1838 = vpop.f32.mrb[0].mxu0
      %v1839 = vpop.f32.mrb[0].mxu0
      %v1840 = vadd.f32 %v1611, %v1839
      %v1841 = vpop.f32.mrb[0].mxu0
      %1842 = vmatprep.mubr.bf16.mxu0 0
      %1843 = vmatmul.mubr.bf16.gmra.mrb[0].mxu0 %v1728
      %v1844 = vpop.f32.mrb[0].mxu0
      %v1845 = vadd.f32 %v1611, %v1844
      %v1846 = vpop.f32.mrb[0].mxu0
      %v1847 = vpop.f32.mrb[0].mxu0
      %v1848 = vadd.f32 %v1611, %v1847
      %v1849 = vpop.f32.mrb[0].mxu0
      %1850 = vmatprep.mubr.bf16.mxu0 0
      %1851 = vmatmul.mubr.bf16.gmra.mrb[0].mxu0 %v1731
      %v1852 = vpop.f32.mrb[0].mxu0
      %v1853 = vadd.f32 %v1611, %v1852
      %v1854 = vpop.f32.mrb[0].mxu0
      %v1855 = vpop.f32.mrb[0].mxu0
      %v1856 = vadd.f32 %v1611, %v1855
      %v1857 = vpop.f32.mrb[0].mxu0
      %1858 = vmatprep.mubr.bf16.mxu0 0
      %1859 = vmatmul.mubr.bf16.gmra.mrb[0].mxu0 %v1734
      %v1860 = vpop.f32.mrb[0].mxu0
      %v1861 = vadd.f32 %v1611, %v1860
      %v1862 = vpop.f32.mrb[0].mxu0
      %v1863 = vpop.f32.mrb[0].mxu0
      %v1864 = vadd.f32 %v1611, %v1863
      %v1865 = vpop.f32.mrb[0].mxu0
      %1866 = vmatprep.mubr.bf16.mxu0 0
      %1867 = vmatmul.mubr.bf16.gmra.mrb[0].mxu0 %v1737
      %v1868 = vpop.f32.mrb[0].mxu0
      %v1869 = vadd.f32 %v1611, %v1868
      %v1870 = vpop.f32.mrb[0].mxu0
      %v1871 = vpop.f32.mrb[0].mxu0
      %v1872 = vadd.f32 %v1611, %v1871
      %v1873 = vpop.f32.mrb[0].mxu0
      %1874 = vmatprep.mubr.bf16.mxu0 0
      %1875 = vmatmul.mubr.bf16.gmra.mrb[0].mxu0 %v1740
      %v1876 = vpop.f32.mrb[0].mxu0
      %v1877 = vadd.f32 %v1611, %v1876
      %v1878 = vpop.f32.mrb[0].mxu0
      %v1879 = vpop.f32.mrb[0].mxu0
      %v1880 = vadd.f32 %v1611, %v1879
      %v1881 = vpop.f32.mrb[0].mxu0
      %1882 = vmatprep.mubr.bf16.mxu0 0
      %1883 = vmatmul.mubr.bf16.gmra.mrb[0].mxu0 %v1743
      %v1884 = vpop.f32.mrb[0].mxu0
      %v1885 = vadd.f32 %v1611, %v1884
      %v1886 = vpop.f32.mrb[0].mxu0
      %v1887 = vpop.f32.mrb[0].mxu0
      %v1888 = vadd.f32 %v1611, %v1887
      %v1889 = vpop.f32.mrb[0].mxu0
      %1890 = vmatprep.mubr.bf16.mxu0 0
      %1891 = vmatmul.mubr.bf16.gmra.mrb[0].mxu0 %v1746
      %v1892 = vpop.f32.mrb[0].mxu0
      %v1893 = vadd.f32 %v1611, %v1892
      %v1894 = vpop.f32.mrb[0].mxu0
      %v1895 = vpop.f32.mrb[0].mxu0
      %v1896 = vadd.f32 %v1611, %v1895
      %v1897 = vpop.f32.mrb[0].mxu0
      %1898 = vmatprep.mubr.bf16.mxu0 0
      %1899 = vmatmul.mubr.bf16.gmra.mrb[0].mxu0 %v1749
      %v1900 = vpop.f32.mrb[0].mxu0
      %v1901 = vadd.f32 %v1611, %v1900
      %v1902 = vpop.f32.mrb[0].mxu0
      %v1903 = vpop.f32.mrb[0].mxu0
      %v1904 = vadd.f32 %v1611, %v1903
      %v1905 = vpop.f32.mrb[0].mxu0
      %1906 = vmatprep.mubr.bf16.mxu0 0
      %1907 = vmatmul.mubr.bf16.gmra.mrb[0].mxu0 %v1752
      %v1908 = vpop.f32.mrb[0].mxu0
      %v1909 = vadd.f32 %v1611, %v1908
      %v1910 = vpop.f32.mrb[0].mxu0
      %v1911 = vpop.f32.mrb[0].mxu0
      %v1912 = vadd.f32 %v1611, %v1911
      %v1913 = vpop.f32.mrb[0].mxu0
      %1914 = vdwg.mxu0
      %v1915 = vadd.f32 %v1444, %v1789
      %v1916 = vadd.f32 %v1447, %v1792
      %v1917 = vadd.f32 %v1452, %v1797
      %v1918 = vadd.f32 %v1455, %v1800
      %v1919 = vadd.f32 %v1460, %v1805
      %v1920 = vadd.f32 %v1463, %v1808
      %v1921 = vadd.f32 %v1468, %v1813
      %v1922 = vadd.f32 %v1471, %v1816
      %v1923 = vadd.f32 %v1476, %v1821
      %v1924 = vadd.f32 %v1479, %v1824
      %v1925 = vadd.f32 %v1484, %v1829
      %v1926 = vadd.f32 %v1487, %v1832
      %v1927 = vadd.f32 %v1492, %v1837
      %v1928 = vadd.f32 %v1495, %v1840
      %v1929 = vadd.f32 %v1500, %v1845
      %v1930 = vadd.f32 %v1503, %v1848
      %v1931 = vadd.f32 %v1508, %v1853
      %v1932 = vadd.f32 %v1511, %v1856
      %v1933 = vadd.f32 %v1516, %v1861
      %v1934 = vadd.f32 %v1519, %v1864
      %v1935 = vadd.f32 %v1524, %v1869
      %v1936 = vadd.f32 %v1527, %v1872
      %v1937 = vadd.f32 %v1532, %v1877
      %v1938 = vadd.f32 %v1535, %v1880
      %v1939 = vadd.f32 %v1540, %v1885
      %v1940 = vadd.f32 %v1543, %v1888
      %v1941 = vadd.f32 %v1548, %v1893
      %v1942 = vadd.f32 %v1551, %v1896
      %v1943 = vadd.f32 %v1556, %v1901
      %v1944 = vadd.f32 %v1559, %v1904
      %v1945 = vadd.f32 %v1564, %v1909
      %v1946 = vadd.f32 %v1567, %v1912
      %v1947 = vmax.f32 %v1915, 0.0
      %v1948 = vmax.f32 %v1916, 0.0
      %v1949 = vmax.f32 %v1917, 0.0
      %v1950 = vmax.f32 %v1918, 0.0
      %v1951 = vmax.f32 %v1919, 0.0
      %v1952 = vmax.f32 %v1920, 0.0
      %v1953 = vmax.f32 %v1921, 0.0
      %v1954 = vmax.f32 %v1922, 0.0
      %v1955 = vmax.f32 %v1923, 0.0
      %v1956 = vmax.f32 %v1924, 0.0
      %v1957 = vmax.f32 %v1925, 0.0
      %v1958 = vmax.f32 %v1926, 0.0
      %v1959 = vmax.f32 %v1927, 0.0
      %v1960 = vmax.f32 %v1928, 0.0
      %v1961 = vmax.f32 %v1929, 0.0
      %v1962 = vmax.f32 %v1930, 0.0
      %v1963 = vmax.f32 %v1931, 0.0
      %v1964 = vmax.f32 %v1932, 0.0
      %v1965 = vmax.f32 %v1933, 0.0
      %v1966 = vmax.f32 %v1934, 0.0
      %v1967 = vmax.f32 %v1935, 0.0
      %v1968 = vmax.f32 %v1936, 0.0
      %v1969 = vmax.f32 %v1937, 0.0
      %v1970 = vmax.f32 %v1938, 0.0
      %v1971 = vmax.f32 %v1939, 0.0
      %v1972 = vmax.f32 %v1940, 0.0
      %v1973 = vmax.f32 %v1941, 0.0
      %v1974 = vmax.f32 %v1942, 0.0
      %v1975 = vmax.f32 %v1943, 0.0
      %v1976 = vmax.f32 %v1944, 0.0
      %v1977 = vmax.f32 %v1945, 0.0
      %v1978 = vmax.f32 %v1946, 0.0
      %v1979 = vpack.c.bf16 %v1948, %v1947
      %v1980 = vpack.c.bf16 %v1950, %v1949
      %v1981 = vpack.c.bf16 %v1952, %v1951
      %v1982 = vpack.c.bf16 %v1954, %v1953
      %v1983 = vpack.c.bf16 %v1956, %v1955
      %v1984 = vpack.c.bf16 %v1958, %v1957
      %v1985 = vpack.c.bf16 %v1960, %v1959
      %v1986 = vpack.c.bf16 %v1962, %v1961
      %v1987 = vpack.c.bf16 %v1964, %v1963
      %v1988 = vpack.c.bf16 %v1966, %v1965
      %v1989 = vpack.c.bf16 %v1968, %v1967
      %v1990 = vpack.c.bf16 %v1970, %v1969
      %v1991 = vpack.c.bf16 %v1972, %v1971
      %v1992 = vpack.c.bf16 %v1974, %v1973
      %v1993 = vpack.c.bf16 %v1976, %v1975
      %v1994 = vpack.c.bf16 %v1978, %v1977
      %v2011 = vunpack.c.l.b16 %v1979
      %v2012 = vunpack.c.h.b16 %v1979
      %v2013 = vunpack.c.l.b16 %v1980
      %v2014 = vunpack.c.h.b16 %v1980
      %v2015 = vunpack.c.l.b16 %v1981
      %v2016 = vunpack.c.h.b16 %v1981
      %v2017 = vunpack.c.l.b16 %v1982
      %v2018 = vunpack.c.h.b16 %v1982
      %v2019 = vunpack.c.l.b16 %v1983
      %v2020 = vunpack.c.h.b16 %v1983
      %v2021 = vunpack.c.l.b16 %v1984
      %v2022 = vunpack.c.h.b16 %v1984
      %v2023 = vunpack.c.l.b16 %v1985
      %v2024 = vunpack.c.h.b16 %v1985
      %v2025 = vunpack.c.l.b16 %v1986
      %v2026 = vunpack.c.h.b16 %v1986
      %v2027 = vunpack.c.l.b16 %v1987
      %v2028 = vunpack.c.h.b16 %v1987
      %v2029 = vunpack.c.l.b16 %v1988
      %v2030 = vunpack.c.h.b16 %v1988
      %v2031 = vunpack.c.l.b16 %v1989
      %v2032 = vunpack.c.h.b16 %v1989
      %v2033 = vunpack.c.l.b16 %v1990
      %v2034 = vunpack.c.h.b16 %v1990
      %v2035 = vunpack.c.l.b16 %v1991
      %v2036 = vunpack.c.h.b16 %v1991
      %v2037 = vunpack.c.l.b16 %v1992
      %v2038 = vunpack.c.h.b16 %v1992
      %v2039 = vunpack.c.l.b16 %v1993
      %v2040 = vunpack.c.h.b16 %v1993
      %v2041 = vunpack.c.l.b16 %v1994
      %v2042 = vunpack.c.h.b16 %v1994
      %v2043 = vpack.c.b16 %v2011, %v2011
      %v2044 = vpack.c.b16 %v2012, %v2012
      %v2045 = vpack.c.b16 %v2013, %v2013
      %v2046 = vpack.c.b16 %v2014, %v2014
      %v2047 = vpack.c.b16 %v2015, %v2015
      %v2048 = vpack.c.b16 %v2016, %v2016
      %v2049 = vpack.c.b16 %v2017, %v2017
      %v2050 = vpack.c.b16 %v2018, %v2018
      %v2051 = vpack.c.b16 %v2019, %v2019
      %v2052 = vpack.c.b16 %v2020, %v2020
      %v2053 = vpack.c.b16 %v2021, %v2021
      %v2054 = vpack.c.b16 %v2022, %v2022
      %v2055 = vpack.c.b16 %v2023, %v2023
      %v2056 = vpack.c.b16 %v2024, %v2024
      %v2057 = vpack.c.b16 %v2025, %v2025
      %v2058 = vpack.c.b16 %v2026, %v2026
      %v2059 = vpack.c.b16 %v2027, %v2027
      %v2060 = vpack.c.b16 %v2028, %v2028
      %v2061 = vpack.c.b16 %v2029, %v2029
      %v2062 = vpack.c.b16 %v2030, %v2030
      %v2063 = vpack.c.b16 %v2031, %v2031
      %v2064 = vpack.c.b16 %v2032, %v2032
      %v2065 = vpack.c.b16 %v2033, %v2033
      %v2066 = vpack.c.b16 %v2034, %v2034
      %v2067 = vpack.c.b16 %v2035, %v2035
      %v2068 = vpack.c.b16 %v2036, %v2036
      %v2069 = vpack.c.b16 %v2037, %v2037
      %v2070 = vpack.c.b16 %v2038, %v2038
      %v2071 = vpack.c.b16 %v2039, %v2039
      %v2072 = vpack.c.b16 %v2040, %v2040
      %v2073 = vpack.c.b16 %v2041, %v2041
      %v2074 = vpack.c.b16 %v2042, %v2042
      %2107 = vst [vmem:[%s332] sm:$0xf] %v2043
      %2108 = vst [vmem:[%s332 + $0x4] sm:$0xf] %v2044
      %2109 = vst [vmem:[%s332 + $0x8] sm:$0xf] %v2045
      %2110 = vst [vmem:[%s332 + $0xc] sm:$0xf] %v2046
      %2111 = vst [vmem:[%s332 + $0x10] sm:$0xf] %v2047
      %2112 = vst [vmem:[%s332 + $0x14] sm:$0xf] %v2048
      %2113 = vst [vmem:[%s332 + $0x18] sm:$0xf] %v2049
      %2114 = vst [vmem:[%s332 + $0x1c] sm:$0xf] %v2050
      %2115 = vst [vmem:[%s332 + $0x20] sm:$0xf] %v2051
      %2116 = vst [vmem:[%s332 + $0x24] sm:$0xf] %v2052
      %2117 = vst [vmem:[%s332 + $0x28] sm:$0xf] %v2053
      %2118 = vst [vmem:[%s332 + $0x2c] sm:$0xf] %v2054
      %2119 = vst [vmem:[%s332 + $0x30] sm:$0xf] %v2055
      %2120 = vst [vmem:[%s332 + $0x34] sm:$0xf] %v2056
      %2121 = vst [vmem:[%s332 + $0x38] sm:$0xf] %v2057
      %2122 = vst [vmem:[%s332 + $0x3c] sm:$0xf] %v2058
      %2123 = vst [vmem:[%s332 + $0x40] sm:$0xf] %v2059
      %2124 = vst [vmem:[%s332 + $0x44] sm:$0xf] %v2060
      %2125 = vst [vmem:[%s332 + $0x48] sm:$0xf] %v2061
      %2126 = vst [vmem:[%s332 + $0x4c] sm:$0xf] %v2062
      %2127 = vst [vmem:[%s332 + $0x50] sm:$0xf] %v2063
      %2128 = vst [vmem:[%s332 + $0x54] sm:$0xf] %v2064
      %2129 = vst [vmem:[%s332 + $0x58] sm:$0xf] %v2065
      %2130 = vst [vmem:[%s332 + $0x5c] sm:$0xf] %v2066
      %2131 = vst [vmem:[%s332 + $0x60] sm:$0xf] %v2067
      %2132 = vst [vmem:[%s332 + $0x64] sm:$0xf] %v2068
      %2133 = vst [vmem:[%s332 + $0x68] sm:$0xf] %v2069
      %2134 = vst [vmem:[%s332 + $0x6c] sm:$0xf] %v2070
      %2135 = vst [vmem:[%s332 + $0x70] sm:$0xf] %v2071
      %2136 = vst [vmem:[%s332 + $0x74] sm:$0xf] %v2072
      %2137 = vst [vmem:[%s332 + $0x78] sm:$0xf] %v2073
      %2138 = vst [vmem:[%s332 + $0x7c] sm:$0xf] %v2074
      %s2139 = smul.u32 32, %s19
      %p2140 = scmp.lt.s32.totalorder %s2139, 63
      %s2141 = scalar_select %p2140, %s2139, 63
      %s2142 = smul.addr %s2141, 4
      %s2143 = scalar_lea.vmem %s8, %s2142
      // Predicated region
      $region53: #{octree_res_block_forward.3} parent=51 // pred_check
        %p2144 = pneg %p215
      $region54: #{octree_res_block_forward.3} parent=51 // pred_check_branch
        %2146 = sbr.rel (%p2144) target = $region56
      $region55: #{octree_res_block_forward.3} parent=51 // pred_region
        %s2147 = smul.u32 32, %s19
      $region56: #{octree_res_block_forward.3} parent=51 // pred_fallthru
        _
    $region52: #{octree_res_block_forward.3} parent=5 // pred_fallthru
      _
    %p2148 = scmp.le.s32.totalorder 2, %s14
    // Predicated region
    $region57: #{octree_res_block_forward.3} parent=5 // pred_check
      %p2149 = pneg %p2148
    $region58: #{octree_res_block_forward.3} parent=5 // pred_check_branch
      %2151 = sbr.rel (%p2149) target = $region60
    $region59: #{octree_res_block_forward.3} parent=5 // pred_region
      %s2152 = ssub.s32 %s14, 2
      // Predicated region
      $region61: #{octree_res_block_forward.3} parent=59 // pred_check
        %p2153 = pneg %p221
      $region62: #{octree_res_block_forward.3} parent=59 // pred_check_branch
        %2155 = sbr.rel (%p2153) target = $region64
      $region63: #{octree_res_block_forward.3} parent=59 // pred_region
        %s2156 = smul.u32 32, %s20
        %p2157 = scmp.lt.s32.totalorder %s2156, 63
        %s2158 = scalar_select %p2157, %s2156, 63
        %s2159 = smul.addr %s2158, 4
        %s2160 = scalar_lea.vmem %s8, %s2159
      $region64: #{octree_res_block_forward.3} parent=59 // pred_fallthru
        _
    $region60: #{octree_res_block_forward.3} parent=5 // pred_fallthru
      _
  $region6: #{octree_res_block_forward.3} parent=0 // loop_footer
    %s18 = sadd.s32 1, %s14
  $region7: #{octree_res_block_forward.3} parent=0 // loop_footer_branch
    %13 = sbr.rel target = $region3
  $region8: #{octree_res_block_forward.3} parent=0 // loop_exit
    _

</llo_original>
